<compile_context>
chip_gen: v6e
topology: v6e:2x2x1
jax: 0.10.0
libtpu: 0.0.40
codegen_flags: <defaults>
</compile_context>

<pallas_src>
import jax
import jax.numpy as jnp
from jax.experimental import pallas as pl
from jax.experimental.pallas import tpu as pltpu

# ----------------------------- model sizes (small surrogate) -----------------
SEQ = 8          # tokenizer.model_max_length surrogate (77 in real SD)
HID = 32         # text encoder hidden size surrogate (768 in real SD)
VOCAB = 64       # tokenizer vocab surrogate
C = 4            # unet.config.in_channels
H = W = 16       # latent spatial size (64 in real SD)
HW = H * W
IMG_C = 3        # VAE output channels
T_STEPS = 4      # num_inference_steps (50 in real SD)
SCALING_FACTOR = 0.18215   # vae.config.scaling_factor
# TODO(synk): the real VAE decoder upsamples latents 8x spatially; the
#             surrogate decoder keeps the latent resolution (per-pixel mix).

# ------------------ compile-time scheduler constants (baked) -----------------
# sigmas = linspace(1.0, 0.1, T_STEPS) ++ [0.0]   (Euler schedule surrogate)
SIGMAS = [1.0 + (0.1 - 1.0) * t / (T_STEPS - 1) for t in range(T_STEPS)] + [0.0]
DSIG = [SIGMAS[t + 1] - SIGMAS[t] for t in range(T_STEPS)]   # Euler deltas
TEMB = [0.1 * SIGMAS[t] for t in range(T_STEPS)]             # "time embedding"
INIT_NOISE_SIGMA = SIGMAS[0]

# ---------------- packed parameter slab layout (rows 8-aligned) --------------
ROW_W_TXT = 0      # (HID, HID) rows  0..31, cols 0..31
ROW_B_TXT = 32     # (1,   HID) row     32 , cols 0..31
ROW_W_CH = 40      # (C,   C  ) rows 40..43, cols 0..3
ROW_W_CTX = 48     # (C,   HID) rows 48..51, cols 0..31
ROW_W_DEC = 56     # (IMG_C, C) rows 56..58, cols 0..3
ROW_B_DEC = 64     # (IMG_C, 1) rows 64..66, col  0
SLAB_ROWS = 72
SLAB_COLS = 128


def _vpu_matmul(a, b, m, n):
    """(m, K) @ (K, n) as an unrolled VPU broadcast-FMA (exact f32, no MXU).

    Contraction depths here are 4 or 32, so the MXU would be >97% padding and
    would add push + result-FIFO-pop latency on a purely serial chain; this
    stays on the vector-ALU slot instead.
    """
    kdim = a.shape[1]
    acc = (jnp.broadcast_to(a[:, 0:1], (m, n)) *
           jnp.broadcast_to(b[0:1, :], (m, n)))
    for k in range(1, kdim):
        acc = acc + (jnp.broadcast_to(a[:, k:k + 1], (m, n)) *
                     jnp.broadcast_to(b[k:k + 1, :], (m, n)))
    return acc


# ------------------------- fused pipeline kernel ------------------------------
def sd_pipeline_kernel(params_ref,        # VMEM (SLAB_ROWS, SLAB_COLS) packed
                       tok_emb_ref,       # VMEM (SEQ, HID)
                       lat0_ref,          # VMEM (C, HW)
                       img_ref):          # VMEM (IMG_C, HW) out
    # --- unpack the parameter slab (static, 8-aligned row bands) -------------
    w_txt = params_ref[ROW_W_TXT:ROW_W_TXT + HID, :][:, :HID]       # (HID, HID)
    b_txt = params_ref[ROW_B_TXT:ROW_B_TXT + 1, :][:, :HID]         # (1, HID)
    w_ch = params_ref[ROW_W_CH:ROW_W_CH + C, :][:, :C]              # (C, C)
    w_ctx = params_ref[ROW_W_CTX:ROW_W_CTX + C, :][:, :HID]         # (C, HID)
    w_dec = params_ref[ROW_W_DEC:ROW_W_DEC + IMG_C, :][:, :C]       # (IMG_C, C)
    b_dec = params_ref[ROW_B_DEC:ROW_B_DEC + IMG_C, :][:, :1]       # (IMG_C, 1)

    # --- stage 1: text encoder (runs once; 32-deep contraction on the VPU) ---
    h = _vpu_matmul(tok_emb_ref[...], w_txt, SEQ, HID)
    text_emb = jnp.tanh(h + b_txt)                                   # (SEQ, HID)

    # --- loop-invariant conditioning + fully hoisted per-step bias -----------
    # mean_s(w_ctx @ text_emb^T) == w_ctx @ mean_s(text_emb)^T  (VPU + XLU)
    ctx_mean = jnp.mean(text_emb, axis=0, keepdims=True)             # (1, HID)
    ctx_col = jnp.sum(w_ctx * ctx_mean, axis=-1, keepdims=True)      # (C, 1)
    ctx_full = jnp.broadcast_to(ctx_col, (C, HW))                    # hoisted bcast
    bias = [ctx_full + TEMB[t] for t in range(T_STEPS)]              # hoisted adds

    # channel-mix weight columns, broadcast once (loop-invariant)
    wch_cols = [jnp.broadcast_to(w_ch[:, k:k + 1], (C, HW)) for k in range(C)]

    # --- stage 2: scheduler init + T Euler denoising steps, all in vregs -----
    lat = lat0_ref[...] * INIT_NOISE_SIGMA                           # init_noise_sigma
    for t in range(T_STEPS):                                         # statically unrolled
        # UNet surrogate: 1x1-conv channel mix as a 4-term VPU FMA (no MXU)
        mixed = wch_cols[0] * jnp.broadcast_to(lat[0:1, :], (C, HW))
        for k in range(1, C):
            mixed = mixed + wch_cols[k] * jnp.broadcast_to(lat[k:k + 1, :],
                                                           (C, HW))
        noise_pred = jnp.tanh(mixed + bias[t])
        # scheduler.step (Euler): prev_sample = sample + (s_{t+1} - s_t) * eps
        lat = lat + DSIG[t] * noise_pred

    # --- stage 3: VAE decode + (x/2 + 0.5).clamp(0, 1) ------------------------
    x = lat * (1.0 / SCALING_FACTOR)                                  # / scaling_factor
    img = _vpu_matmul(w_dec, x, IMG_C, HW)                            # (IMG_C, HW)
    img = jnp.tanh(img + b_dec)                                       # decoder ~ [-1, 1]
    img_ref[...] = jnp.clip(img * 0.5 + 0.5, 0.0, 1.0)


def generate_image(param_slab, tok_emb, lat0):
    vmem = pl.BlockSpec(memory_space=pltpu.MemorySpace.VMEM)
    flops = (2 * SEQ * HID * HID +            # text encoder
             2 * C * C * HW * T_STEPS +       # unet channel mixes
             2 * IMG_C * C * HW)              # vae decode
    transc = SEQ * HID + C * HW * T_STEPS + IMG_C * HW   # tanh
    bytes_acc = 4 * (SLAB_ROWS * SLAB_COLS + SEQ * HID + C * HW + IMG_C * HW)
    return pl.pallas_call(
        sd_pipeline_kernel,
        out_shape=jax.ShapeDtypeStruct((IMG_C, HW), jnp.float32),
        in_specs=[vmem, vmem, vmem],          # packed params, tok_emb, lat0
        out_specs=vmem,
        cost_estimate=pl.CostEstimate(flops=flops, transcendentals=transc,
                                      bytes_accessed=bytes_acc),
    )(param_slab, tok_emb, lat0)


# ----------------------------- glue: full forward -----------------------------
def tokenize(prompt: str) -> jnp.ndarray:
    # deterministic toy tokenizer: char codes mod VOCAB, padded/truncated to SEQ
    ids = [ord(c) % VOCAB for c in prompt][:SEQ]
    ids = ids + [0] * (SEQ - len(ids))
    return jnp.asarray(ids, dtype=jnp.int32)


def init_params(key):
    ks = jax.random.split(key, 6)
    return {
        "embedding": jax.random.normal(ks[0], (VOCAB, HID), jnp.float32) * 0.1,
        "w_txt": jax.random.normal(ks[1], (HID, HID), jnp.float32) * 0.1,
        "b_txt": jax.random.normal(ks[2], (1, HID), jnp.float32) * 0.01,
        "w_ch": jax.random.normal(ks[3], (C, C), jnp.float32) * 0.2,
        "w_ctx": jax.random.normal(ks[4], (C, HID), jnp.float32) * 0.1,
        "w_dec": jax.random.normal(ks[5], (IMG_C, C), jnp.float32) * 0.5,
        "b_dec": jnp.zeros((IMG_C, 1), jnp.float32),
    }


def pack_params(params):
    """Pack the 6 small parameter tensors into one (72, 128) f32 VMEM slab."""
    slab = jnp.zeros((SLAB_ROWS, SLAB_COLS), jnp.float32)
    slab = slab.at[ROW_W_TXT:ROW_W_TXT + HID, :HID].set(params["w_txt"])
    slab = slab.at[ROW_B_TXT:ROW_B_TXT + 1, :HID].set(params["b_txt"])
    slab = slab.at[ROW_W_CH:ROW_W_CH + C, :C].set(params["w_ch"])
    slab = slab.at[ROW_W_CTX:ROW_W_CTX + C, :HID].set(params["w_ctx"])
    slab = slab.at[ROW_W_DEC:ROW_W_DEC + IMG_C, :C].set(params["w_dec"])
    slab = slab.at[ROW_B_DEC:ROW_B_DEC + IMG_C, :1].set(params["b_dec"])
    return slab


def simple_image_generator(prompt: str, params, noise_key):
    # 1) tokenizer + embedding lookup (glue)
    token_ids = tokenize(prompt)
    tok_emb = params["embedding"][token_ids]                      # (SEQ, HID)
    # 2) initial latents (torch.randn analog) in (C, H*W) layout
    lat0 = jax.random.normal(noise_key, (C, HW), jnp.float32)
    # 3) pack parameters once into a single padded slab (one DMA descriptor)
    param_slab = pack_params(params)
    # 4) single fused Pallas kernel: text-encode -> T denoise steps -> decode
    image = generate_image(param_slab, tok_emb, lat0)             # (IMG_C, HW)
    # back to NCHW like the PyTorch module
    return image.reshape(1, IMG_C, H, W)


if __name__ == "__main__":
    key = jax.random.PRNGKey(0)
    pkey, nkey = jax.random.split(key)
    params = init_params(pkey)

    image = simple_image_generator("a photo of an astronaut riding a horse",
                                   params, nkey)
    image = jax.block_until_ready(image)

    assert image.shape == (1, IMG_C, H, W)
    assert bool(jnp.all(image >= 0.0)) and bool(jnp.all(image <= 1.0))
    assert bool(jnp.all(jnp.isfinite(image)))
    print("KERNEL_OK")
</pallas_src>

<mosaic_0001>
module attributes {stable_mosaic.version = 11 : i64} {
  func.func @sd_pipeline_kernel(%arg0: memref<72x128xf32, #tpu.memory_space<vmem>>, %arg1: memref<8x32xf32, #tpu.memory_space<vmem>>, %arg2: memref<4x256xf32, #tpu.memory_space<vmem>>, %arg3: memref<3x256xf32, #tpu.memory_space<vmem>>) attributes {dimension_semantics = [], scalar_prefetch = 0 : i64, scratch_operands = 0 : i64, tpu.core_type = #tpu.core_type<tc>} {
    %c0 = arith.constant 0 : index
    %c0_0 = arith.constant 0 : index
    %0 = vector.load %arg0[%c0, %c0_0] : memref<72x128xf32, #tpu.memory_space<vmem>>, vector<32x128xf32>
    %1 = vector.extract_strided_slice %0 {offsets = [0, 0], sizes = [32, 32], strides = [1, 1]} : vector<32x128xf32> to vector<32x32xf32>
    %c32 = arith.constant 32 : index
    %c0_1 = arith.constant 0 : index
    %2 = vector.load %arg0[%c32, %c0_1] : memref<72x128xf32, #tpu.memory_space<vmem>>, vector<1x128xf32>
    %3 = vector.extract_strided_slice %2 {offsets = [0, 0], sizes = [1, 32], strides = [1, 1]} : vector<1x128xf32> to vector<1x32xf32>
    %c40 = arith.constant 40 : index
    %c0_2 = arith.constant 0 : index
    %4 = vector.load %arg0[%c40, %c0_2] : memref<72x128xf32, #tpu.memory_space<vmem>>, vector<4x128xf32>
    %5 = vector.extract_strided_slice %4 {offsets = [0, 0], sizes = [4, 4], strides = [1, 1]} : vector<4x128xf32> to vector<4x4xf32>
    %c48 = arith.constant 48 : index
    %c0_3 = arith.constant 0 : index
    %6 = vector.load %arg0[%c48, %c0_3] : memref<72x128xf32, #tpu.memory_space<vmem>>, vector<4x128xf32>
    %7 = vector.extract_strided_slice %6 {offsets = [0, 0], sizes = [4, 32], strides = [1, 1]} : vector<4x128xf32> to vector<4x32xf32>
    %c56 = arith.constant 56 : index
    %c0_4 = arith.constant 0 : index
    %8 = vector.load %arg0[%c56, %c0_4] : memref<72x128xf32, #tpu.memory_space<vmem>>, vector<3x128xf32>
    %9 = vector.extract_strided_slice %8 {offsets = [0, 0], sizes = [3, 4], strides = [1, 1]} : vector<3x128xf32> to vector<3x4xf32>
    %c64 = arith.constant 64 : index
    %c0_5 = arith.constant 0 : index
    %10 = vector.load %arg0[%c64, %c0_5] : memref<72x128xf32, #tpu.memory_space<vmem>>, vector<3x128xf32>
    %11 = vector.extract_strided_slice %10 {offsets = [0, 0], sizes = [3, 1], strides = [1, 1]} : vector<3x128xf32> to vector<3x1xf32>
    %c0_6 = arith.constant 0 : index
    %c0_7 = arith.constant 0 : index
    %12 = vector.load %arg1[%c0_6, %c0_7] : memref<8x32xf32, #tpu.memory_space<vmem>>, vector<8x32xf32>
    %13 = vector.extract_strided_slice %12 {offsets = [0, 0], sizes = [8, 1], strides = [1, 1]} : vector<8x32xf32> to vector<8x1xf32>
    %14 = vector.shape_cast %13 : vector<8x1xf32> to vector<8x1xf32>
    %15 = vector.broadcast %14 : vector<8x1xf32> to vector<8x32xf32>
    %16 = vector.extract_strided_slice %1 {offsets = [0, 0], sizes = [1, 32], strides = [1, 1]} : vector<32x32xf32> to vector<1x32xf32>
    %17 = vector.shape_cast %16 : vector<1x32xf32> to vector<1x32xf32>
    %18 = vector.broadcast %17 : vector<1x32xf32> to vector<8x32xf32>
    %19 = arith.mulf %15, %18 : vector<8x32xf32>
    %20 = vector.extract_strided_slice %12 {offsets = [0, 1], sizes = [8, 1], strides = [1, 1]} : vector<8x32xf32> to vector<8x1xf32>
    %21 = vector.shape_cast %20 : vector<8x1xf32> to vector<8x1xf32>
    %22 = vector.broadcast %21 : vector<8x1xf32> to vector<8x32xf32>
    %23 = vector.extract_strided_slice %1 {offsets = [1, 0], sizes = [1, 32], strides = [1, 1]} : vector<32x32xf32> to vector<1x32xf32>
    %24 = vector.shape_cast %23 : vector<1x32xf32> to vector<1x32xf32>
    %25 = vector.broadcast %24 : vector<1x32xf32> to vector<8x32xf32>
    %26 = arith.mulf %22, %25 : vector<8x32xf32>
    %27 = arith.addf %19, %26 : vector<8x32xf32>
    %28 = vector.extract_strided_slice %12 {offsets = [0, 2], sizes = [8, 1], strides = [1, 1]} : vector<8x32xf32> to vector<8x1xf32>
    %29 = vector.shape_cast %28 : vector<8x1xf32> to vector<8x1xf32>
    %30 = vector.broadcast %29 : vector<8x1xf32> to vector<8x32xf32>
    %31 = vector.extract_strided_slice %1 {offsets = [2, 0], sizes = [1, 32], strides = [1, 1]} : vector<32x32xf32> to vector<1x32xf32>
    %32 = vector.shape_cast %31 : vector<1x32xf32> to vector<1x32xf32>
    %33 = vector.broadcast %32 : vector<1x32xf32> to vector<8x32xf32>
    %34 = arith.mulf %30, %33 : vector<8x32xf32>
    %35 = arith.addf %27, %34 : vector<8x32xf32>
    %36 = vector.extract_strided_slice %12 {offsets = [0, 3], sizes = [8, 1], strides = [1, 1]} : vector<8x32xf32> to vector<8x1xf32>
    %37 = vector.shape_cast %36 : vector<8x1xf32> to vector<8x1xf32>
    %38 = vector.broadcast %37 : vector<8x1xf32> to vector<8x32xf32>
    %39 = vector.extract_strided_slice %1 {offsets = [3, 0], sizes = [1, 32], strides = [1, 1]} : vector<32x32xf32> to vector<1x32xf32>
    %40 = vector.shape_cast %39 : vector<1x32xf32> to vector<1x32xf32>
    %41 = vector.broadcast %40 : vector<1x32xf32> to vector<8x32xf32>
    %42 = arith.mulf %38, %41 : vector<8x32xf32>
    %43 = arith.addf %35, %42 : vector<8x32xf32>
    %44 = vector.extract_strided_slice %12 {offsets = [0, 4], sizes = [8, 1], strides = [1, 1]} : vector<8x32xf32> to vector<8x1xf32>
    %45 = vector.shape_cast %44 : vector<8x1xf32> to vector<8x1xf32>
    %46 = vector.broadcast %45 : vector<8x1xf32> to vector<8x32xf32>
    %47 = vector.extract_strided_slice %1 {offsets = [4, 0], sizes = [1, 32], strides = [1, 1]} : vector<32x32xf32> to vector<1x32xf32>
    %48 = vector.shape_cast %47 : vector<1x32xf32> to vector<1x32xf32>
    %49 = vector.broadcast %48 : vector<1x32xf32> to vector<8x32xf32>
    %50 = arith.mulf %46, %49 : vector<8x32xf32>
    %51 = arith.addf %43, %50 : vector<8x32xf32>
    %52 = vector.extract_strided_slice %12 {offsets = [0, 5], sizes = [8, 1], strides = [1, 1]} : vector<8x32xf32> to vector<8x1xf32>
    %53 = vector.shape_cast %52 : vector<8x1xf32> to vector<8x1xf32>
    %54 = vector.broadcast %53 : vector<8x1xf32> to vector<8x32xf32>
    %55 = vector.extract_strided_slice %1 {offsets = [5, 0], sizes = [1, 32], strides = [1, 1]} : vector<32x32xf32> to vector<1x32xf32>
    %56 = vector.shape_cast %55 : vector<1x32xf32> to vector<1x32xf32>
    %57 = vector.broadcast %56 : vector<1x32xf32> to vector<8x32xf32>
    %58 = arith.mulf %54, %57 : vector<8x32xf32>
    %59 = arith.addf %51, %58 : vector<8x32xf32>
    %60 = vector.extract_strided_slice %12 {offsets = [0, 6], sizes = [8, 1], strides = [1, 1]} : vector<8x32xf32> to vector<8x1xf32>
    %61 = vector.shape_cast %60 : vector<8x1xf32> to vector<8x1xf32>
    %62 = vector.broadcast %61 : vector<8x1xf32> to vector<8x32xf32>
    %63 = vector.extract_strided_slice %1 {offsets = [6, 0], sizes = [1, 32], strides = [1, 1]} : vector<32x32xf32> to vector<1x32xf32>
    %64 = vector.shape_cast %63 : vector<1x32xf32> to vector<1x32xf32>
    %65 = vector.broadcast %64 : vector<1x32xf32> to vector<8x32xf32>
    %66 = arith.mulf %62, %65 : vector<8x32xf32>
    %67 = arith.addf %59, %66 : vector<8x32xf32>
    %68 = vector.extract_strided_slice %12 {offsets = [0, 7], sizes = [8, 1], strides = [1, 1]} : vector<8x32xf32> to vector<8x1xf32>
    %69 = vector.shape_cast %68 : vector<8x1xf32> to vector<8x1xf32>
    %70 = vector.broadcast %69 : vector<8x1xf32> to vector<8x32xf32>
    %71 = vector.extract_strided_slice %1 {offsets = [7, 0], sizes = [1, 32], strides = [1, 1]} : vector<32x32xf32> to vector<1x32xf32>
    %72 = vector.shape_cast %71 : vector<1x32xf32> to vector<1x32xf32>
    %73 = vector.broadcast %72 : vector<1x32xf32> to vector<8x32xf32>
    %74 = arith.mulf %70, %73 : vector<8x32xf32>
    %75 = arith.addf %67, %74 : vector<8x32xf32>
    %76 = vector.extract_strided_slice %12 {offsets = [0, 8], sizes = [8, 1], strides = [1, 1]} : vector<8x32xf32> to vector<8x1xf32>
    %77 = vector.shape_cast %76 : vector<8x1xf32> to vector<8x1xf32>
    %78 = vector.broadcast %77 : vector<8x1xf32> to vector<8x32xf32>
    %79 = vector.extract_strided_slice %1 {offsets = [8, 0], sizes = [1, 32], strides = [1, 1]} : vector<32x32xf32> to vector<1x32xf32>
    %80 = vector.shape_cast %79 : vector<1x32xf32> to vector<1x32xf32>
    %81 = vector.broadcast %80 : vector<1x32xf32> to vector<8x32xf32>
    %82 = arith.mulf %78, %81 : vector<8x32xf32>
    %83 = arith.addf %75, %82 : vector<8x32xf32>
    %84 = vector.extract_strided_slice %12 {offsets = [0, 9], sizes = [8, 1], strides = [1, 1]} : vector<8x32xf32> to vector<8x1xf32>
    %85 = vector.shape_cast %84 : vector<8x1xf32> to vector<8x1xf32>
    %86 = vector.broadcast %85 : vector<8x1xf32> to vector<8x32xf32>
    %87 = vector.extract_strided_slice %1 {offsets = [9, 0], sizes = [1, 32], strides = [1, 1]} : vector<32x32xf32> to vector<1x32xf32>
    %88 = vector.shape_cast %87 : vector<1x32xf32> to vector<1x32xf32>
    %89 = vector.broadcast %88 : vector<1x32xf32> to vector<8x32xf32>
    %90 = arith.mulf %86, %89 : vector<8x32xf32>
    %91 = arith.addf %83, %90 : vector<8x32xf32>
    %92 = vector.extract_strided_slice %12 {offsets = [0, 10], sizes = [8, 1], strides = [1, 1]} : vector<8x32xf32> to vector<8x1xf32>
    %93 = vector.shape_cast %92 : vector<8x1xf32> to vector<8x1xf32>
    %94 = vector.broadcast %93 : vector<8x1xf32> to vector<8x32xf32>
    %95 = vector.extract_strided_slice %1 {offsets = [10, 0], sizes = [1, 32], strides = [1, 1]} : vector<32x32xf32> to vector<1x32xf32>
    %96 = vector.shape_cast %95 : vector<1x32xf32> to vector<1x32xf32>
    %97 = vector.broadcast %96 : vector<1x32xf32> to vector<8x32xf32>
    %98 = arith.mulf %94, %97 : vector<8x32xf32>
    %99 = arith.addf %91, %98 : vector<8x32xf32>
    %100 = vector.extract_strided_slice %12 {offsets = [0, 11], sizes = [8, 1], strides = [1, 1]} : vector<8x32xf32> to vector<8x1xf32>
    %101 = vector.shape_cast %100 : vector<8x1xf32> to vector<8x1xf32>
    %102 = vector.broadcast %101 : vector<8x1xf32> to vector<8x32xf32>
    %103 = vector.extract_strided_slice %1 {offsets = [11, 0], sizes = [1, 32], strides = [1, 1]} : vector<32x32xf32> to vector<1x32xf32>
    %104 = vector.shape_cast %103 : vector<1x32xf32> to vector<1x32xf32>
    %105 = vector.broadcast %104 : vector<1x32xf32> to vector<8x32xf32>
    %106 = arith.mulf %102, %105 : vector<8x32xf32>
    %107 = arith.addf %99, %106 : vector<8x32xf32>
    %108 = vector.extract_strided_slice %12 {offsets = [0, 12], sizes = [8, 1], strides = [1, 1]} : vector<8x32xf32> to vector<8x1xf32>
    %109 = vector.shape_cast %108 : vector<8x1xf32> to vector<8x1xf32>
    %110 = vector.broadcast %109 : vector<8x1xf32> to vector<8x32xf32>
    %111 = vector.extract_strided_slice %1 {offsets = [12, 0], sizes = [1, 32], strides = [1, 1]} : vector<32x32xf32> to vector<1x32xf32>
    %112 = vector.shape_cast %111 : vector<1x32xf32> to vector<1x32xf32>
    %113 = vector.broadcast %112 : vector<1x32xf32> to vector<8x32xf32>
    %114 = arith.mulf %110, %113 : vector<8x32xf32>
    %115 = arith.addf %107, %114 : vector<8x32xf32>
    %116 = vector.extract_strided_slice %12 {offsets = [0, 13], sizes = [8, 1], strides = [1, 1]} : vector<8x32xf32> to vector<8x1xf32>
    %117 = vector.shape_cast %116 : vector<8x1xf32> to vector<8x1xf32>
    %118 = vector.broadcast %117 : vector<8x1xf32> to vector<8x32xf32>
    %119 = vector.extract_strided_slice %1 {offsets = [13, 0], sizes = [1, 32], strides = [1, 1]} : vector<32x32xf32> to vector<1x32xf32>
    %120 = vector.shape_cast %119 : vector<1x32xf32> to vector<1x32xf32>
    %121 = vector.broadcast %120 : vector<1x32xf32> to vector<8x32xf32>
    %122 = arith.mulf %118, %121 : vector<8x32xf32>
    %123 = arith.addf %115, %122 : vector<8x32xf32>
    %124 = vector.extract_strided_slice %12 {offsets = [0, 14], sizes = [8, 1], strides = [1, 1]} : vector<8x32xf32> to vector<8x1xf32>
    %125 = vector.shape_cast %124 : vector<8x1xf32> to vector<8x1xf32>
    %126 = vector.broadcast %125 : vector<8x1xf32> to vector<8x32xf32>
    %127 = vector.extract_strided_slice %1 {offsets = [14, 0], sizes = [1, 32], strides = [1, 1]} : vector<32x32xf32> to vector<1x32xf32>
    %128 = vector.shape_cast %127 : vector<1x32xf32> to vector<1x32xf32>
    %129 = vector.broadcast %128 : vector<1x32xf32> to vector<8x32xf32>
    %130 = arith.mulf %126, %129 : vector<8x32xf32>
    %131 = arith.addf %123, %130 : vector<8x32xf32>
    %132 = vector.extract_strided_slice %12 {offsets = [0, 15], sizes = [8, 1], strides = [1, 1]} : vector<8x32xf32> to vector<8x1xf32>
    %133 = vector.shape_cast %132 : vector<8x1xf32> to vector<8x1xf32>
    %134 = vector.broadcast %133 : vector<8x1xf32> to vector<8x32xf32>
    %135 = vector.extract_strided_slice %1 {offsets = [15, 0], sizes = [1, 32], strides = [1, 1]} : vector<32x32xf32> to vector<1x32xf32>
    %136 = vector.shape_cast %135 : vector<1x32xf32> to vector<1x32xf32>
    %137 = vector.broadcast %136 : vector<1x32xf32> to vector<8x32xf32>
    %138 = arith.mulf %134, %137 : vector<8x32xf32>
    %139 = arith.addf %131, %138 : vector<8x32xf32>
    %140 = vector.extract_strided_slice %12 {offsets = [0, 16], sizes = [8, 1], strides = [1, 1]} : vector<8x32xf32> to vector<8x1xf32>
    %141 = vector.shape_cast %140 : vector<8x1xf32> to vector<8x1xf32>
    %142 = vector.broadcast %141 : vector<8x1xf32> to vector<8x32xf32>
    %143 = vector.extract_strided_slice %1 {offsets = [16, 0], sizes = [1, 32], strides = [1, 1]} : vector<32x32xf32> to vector<1x32xf32>
    %144 = vector.shape_cast %143 : vector<1x32xf32> to vector<1x32xf32>
    %145 = vector.broadcast %144 : vector<1x32xf32> to vector<8x32xf32>
    %146 = arith.mulf %142, %145 : vector<8x32xf32>
    %147 = arith.addf %139, %146 : vector<8x32xf32>
    %148 = vector.extract_strided_slice %12 {offsets = [0, 17], sizes = [8, 1], strides = [1, 1]} : vector<8x32xf32> to vector<8x1xf32>
    %149 = vector.shape_cast %148 : vector<8x1xf32> to vector<8x1xf32>
    %150 = vector.broadcast %149 : vector<8x1xf32> to vector<8x32xf32>
    %151 = vector.extract_strided_slice %1 {offsets = [17, 0], sizes = [1, 32], strides = [1, 1]} : vector<32x32xf32> to vector<1x32xf32>
    %152 = vector.shape_cast %151 : vector<1x32xf32> to vector<1x32xf32>
    %153 = vector.broadcast %152 : vector<1x32xf32> to vector<8x32xf32>
    %154 = arith.mulf %150, %153 : vector<8x32xf32>
    %155 = arith.addf %147, %154 : vector<8x32xf32>
    %156 = vector.extract_strided_slice %12 {offsets = [0, 18], sizes = [8, 1], strides = [1, 1]} : vector<8x32xf32> to vector<8x1xf32>
    %157 = vector.shape_cast %156 : vector<8x1xf32> to vector<8x1xf32>
    %158 = vector.broadcast %157 : vector<8x1xf32> to vector<8x32xf32>
    %159 = vector.extract_strided_slice %1 {offsets = [18, 0], sizes = [1, 32], strides = [1, 1]} : vector<32x32xf32> to vector<1x32xf32>
    %160 = vector.shape_cast %159 : vector<1x32xf32> to vector<1x32xf32>
    %161 = vector.broadcast %160 : vector<1x32xf32> to vector<8x32xf32>
    %162 = arith.mulf %158, %161 : vector<8x32xf32>
    %163 = arith.addf %155, %162 : vector<8x32xf32>
    %164 = vector.extract_strided_slice %12 {offsets = [0, 19], sizes = [8, 1], strides = [1, 1]} : vector<8x32xf32> to vector<8x1xf32>
    %165 = vector.shape_cast %164 : vector<8x1xf32> to vector<8x1xf32>
    %166 = vector.broadcast %165 : vector<8x1xf32> to vector<8x32xf32>
    %167 = vector.extract_strided_slice %1 {offsets = [19, 0], sizes = [1, 32], strides = [1, 1]} : vector<32x32xf32> to vector<1x32xf32>
    %168 = vector.shape_cast %167 : vector<1x32xf32> to vector<1x32xf32>
    %169 = vector.broadcast %168 : vector<1x32xf32> to vector<8x32xf32>
    %170 = arith.mulf %166, %169 : vector<8x32xf32>
    %171 = arith.addf %163, %170 : vector<8x32xf32>
    %172 = vector.extract_strided_slice %12 {offsets = [0, 20], sizes = [8, 1], strides = [1, 1]} : vector<8x32xf32> to vector<8x1xf32>
    %173 = vector.shape_cast %172 : vector<8x1xf32> to vector<8x1xf32>
    %174 = vector.broadcast %173 : vector<8x1xf32> to vector<8x32xf32>
    %175 = vector.extract_strided_slice %1 {offsets = [20, 0], sizes = [1, 32], strides = [1, 1]} : vector<32x32xf32> to vector<1x32xf32>
    %176 = vector.shape_cast %175 : vector<1x32xf32> to vector<1x32xf32>
    %177 = vector.broadcast %176 : vector<1x32xf32> to vector<8x32xf32>
    %178 = arith.mulf %174, %177 : vector<8x32xf32>
    %179 = arith.addf %171, %178 : vector<8x32xf32>
    %180 = vector.extract_strided_slice %12 {offsets = [0, 21], sizes = [8, 1], strides = [1, 1]} : vector<8x32xf32> to vector<8x1xf32>
    %181 = vector.shape_cast %180 : vector<8x1xf32> to vector<8x1xf32>
    %182 = vector.broadcast %181 : vector<8x1xf32> to vector<8x32xf32>
    %183 = vector.extract_strided_slice %1 {offsets = [21, 0], sizes = [1, 32], strides = [1, 1]} : vector<32x32xf32> to vector<1x32xf32>
    %184 = vector.shape_cast %183 : vector<1x32xf32> to vector<1x32xf32>
    %185 = vector.broadcast %184 : vector<1x32xf32> to vector<8x32xf32>
    %186 = arith.mulf %182, %185 : vector<8x32xf32>
    %187 = arith.addf %179, %186 : vector<8x32xf32>
    %188 = vector.extract_strided_slice %12 {offsets = [0, 22], sizes = [8, 1], strides = [1, 1]} : vector<8x32xf32> to vector<8x1xf32>
    %189 = vector.shape_cast %188 : vector<8x1xf32> to vector<8x1xf32>
    %190 = vector.broadcast %189 : vector<8x1xf32> to vector<8x32xf32>
    %191 = vector.extract_strided_slice %1 {offsets = [22, 0], sizes = [1, 32], strides = [1, 1]} : vector<32x32xf32> to vector<1x32xf32>
    %192 = vector.shape_cast %191 : vector<1x32xf32> to vector<1x32xf32>
    %193 = vector.broadcast %192 : vector<1x32xf32> to vector<8x32xf32>
    %194 = arith.mulf %190, %193 : vector<8x32xf32>
    %195 = arith.addf %187, %194 : vector<8x32xf32>
    %196 = vector.extract_strided_slice %12 {offsets = [0, 23], sizes = [8, 1], strides = [1, 1]} : vector<8x32xf32> to vector<8x1xf32>
    %197 = vector.shape_cast %196 : vector<8x1xf32> to vector<8x1xf32>
    %198 = vector.broadcast %197 : vector<8x1xf32> to vector<8x32xf32>
    %199 = vector.extract_strided_slice %1 {offsets = [23, 0], sizes = [1, 32], strides = [1, 1]} : vector<32x32xf32> to vector<1x32xf32>
    %200 = vector.shape_cast %199 : vector<1x32xf32> to vector<1x32xf32>
    %201 = vector.broadcast %200 : vector<1x32xf32> to vector<8x32xf32>
    %202 = arith.mulf %198, %201 : vector<8x32xf32>
    %203 = arith.addf %195, %202 : vector<8x32xf32>
    %204 = vector.extract_strided_slice %12 {offsets = [0, 24], sizes = [8, 1], strides = [1, 1]} : vector<8x32xf32> to vector<8x1xf32>
    %205 = vector.shape_cast %204 : vector<8x1xf32> to vector<8x1xf32>
    %206 = vector.broadcast %205 : vector<8x1xf32> to vector<8x32xf32>
    %207 = vector.extract_strided_slice %1 {offsets = [24, 0], sizes = [1, 32], strides = [1, 1]} : vector<32x32xf32> to vector<1x32xf32>
    %208 = vector.shape_cast %207 : vector<1x32xf32> to vector<1x32xf32>
    %209 = vector.broadcast %208 : vector<1x32xf32> to vector<8x32xf32>
    %210 = arith.mulf %206, %209 : vector<8x32xf32>
    %211 = arith.addf %203, %210 : vector<8x32xf32>
    %212 = vector.extract_strided_slice %12 {offsets = [0, 25], sizes = [8, 1], strides = [1, 1]} : vector<8x32xf32> to vector<8x1xf32>
    %213 = vector.shape_cast %212 : vector<8x1xf32> to vector<8x1xf32>
    %214 = vector.broadcast %213 : vector<8x1xf32> to vector<8x32xf32>
    %215 = vector.extract_strided_slice %1 {offsets = [25, 0], sizes = [1, 32], strides = [1, 1]} : vector<32x32xf32> to vector<1x32xf32>
    %216 = vector.shape_cast %215 : vector<1x32xf32> to vector<1x32xf32>
    %217 = vector.broadcast %216 : vector<1x32xf32> to vector<8x32xf32>
    %218 = arith.mulf %214, %217 : vector<8x32xf32>
    %219 = arith.addf %211, %218 : vector<8x32xf32>
    %220 = vector.extract_strided_slice %12 {offsets = [0, 26], sizes = [8, 1], strides = [1, 1]} : vector<8x32xf32> to vector<8x1xf32>
    %221 = vector.shape_cast %220 : vector<8x1xf32> to vector<8x1xf32>
    %222 = vector.broadcast %221 : vector<8x1xf32> to vector<8x32xf32>
    %223 = vector.extract_strided_slice %1 {offsets = [26, 0], sizes = [1, 32], strides = [1, 1]} : vector<32x32xf32> to vector<1x32xf32>
    %224 = vector.shape_cast %223 : vector<1x32xf32> to vector<1x32xf32>
    %225 = vector.broadcast %224 : vector<1x32xf32> to vector<8x32xf32>
    %226 = arith.mulf %222, %225 : vector<8x32xf32>
    %227 = arith.addf %219, %226 : vector<8x32xf32>
    %228 = vector.extract_strided_slice %12 {offsets = [0, 27], sizes = [8, 1], strides = [1, 1]} : vector<8x32xf32> to vector<8x1xf32>
    %229 = vector.shape_cast %228 : vector<8x1xf32> to vector<8x1xf32>
    %230 = vector.broadcast %229 : vector<8x1xf32> to vector<8x32xf32>
    %231 = vector.extract_strided_slice %1 {offsets = [27, 0], sizes = [1, 32], strides = [1, 1]} : vector<32x32xf32> to vector<1x32xf32>
    %232 = vector.shape_cast %231 : vector<1x32xf32> to vector<1x32xf32>
    %233 = vector.broadcast %232 : vector<1x32xf32> to vector<8x32xf32>
    %234 = arith.mulf %230, %233 : vector<8x32xf32>
    %235 = arith.addf %227, %234 : vector<8x32xf32>
    %236 = vector.extract_strided_slice %12 {offsets = [0, 28], sizes = [8, 1], strides = [1, 1]} : vector<8x32xf32> to vector<8x1xf32>
    %237 = vector.shape_cast %236 : vector<8x1xf32> to vector<8x1xf32>
    %238 = vector.broadcast %237 : vector<8x1xf32> to vector<8x32xf32>
    %239 = vector.extract_strided_slice %1 {offsets = [28, 0], sizes = [1, 32], strides = [1, 1]} : vector<32x32xf32> to vector<1x32xf32>
    %240 = vector.shape_cast %239 : vector<1x32xf32> to vector<1x32xf32>
    %241 = vector.broadcast %240 : vector<1x32xf32> to vector<8x32xf32>
    %242 = arith.mulf %238, %241 : vector<8x32xf32>
    %243 = arith.addf %235, %242 : vector<8x32xf32>
    %244 = vector.extract_strided_slice %12 {offsets = [0, 29], sizes = [8, 1], strides = [1, 1]} : vector<8x32xf32> to vector<8x1xf32>
    %245 = vector.shape_cast %244 : vector<8x1xf32> to vector<8x1xf32>
    %246 = vector.broadcast %245 : vector<8x1xf32> to vector<8x32xf32>
    %247 = vector.extract_strided_slice %1 {offsets = [29, 0], sizes = [1, 32], strides = [1, 1]} : vector<32x32xf32> to vector<1x32xf32>
    %248 = vector.shape_cast %247 : vector<1x32xf32> to vector<1x32xf32>
    %249 = vector.broadcast %248 : vector<1x32xf32> to vector<8x32xf32>
    %250 = arith.mulf %246, %249 : vector<8x32xf32>
    %251 = arith.addf %243, %250 : vector<8x32xf32>
    %252 = vector.extract_strided_slice %12 {offsets = [0, 30], sizes = [8, 1], strides = [1, 1]} : vector<8x32xf32> to vector<8x1xf32>
    %253 = vector.shape_cast %252 : vector<8x1xf32> to vector<8x1xf32>
    %254 = vector.broadcast %253 : vector<8x1xf32> to vector<8x32xf32>
    %255 = vector.extract_strided_slice %1 {offsets = [30, 0], sizes = [1, 32], strides = [1, 1]} : vector<32x32xf32> to vector<1x32xf32>
    %256 = vector.shape_cast %255 : vector<1x32xf32> to vector<1x32xf32>
    %257 = vector.broadcast %256 : vector<1x32xf32> to vector<8x32xf32>
    %258 = arith.mulf %254, %257 : vector<8x32xf32>
    %259 = arith.addf %251, %258 : vector<8x32xf32>
    %260 = vector.extract_strided_slice %12 {offsets = [0, 31], sizes = [8, 1], strides = [1, 1]} : vector<8x32xf32> to vector<8x1xf32>
    %261 = vector.shape_cast %260 : vector<8x1xf32> to vector<8x1xf32>
    %262 = vector.broadcast %261 : vector<8x1xf32> to vector<8x32xf32>
    %263 = vector.extract_strided_slice %1 {offsets = [31, 0], sizes = [1, 32], strides = [1, 1]} : vector<32x32xf32> to vector<1x32xf32>
    %264 = vector.shape_cast %263 : vector<1x32xf32> to vector<1x32xf32>
    %265 = vector.broadcast %264 : vector<1x32xf32> to vector<8x32xf32>
    %266 = arith.mulf %262, %265 : vector<8x32xf32>
    %267 = arith.addf %259, %266 : vector<8x32xf32>
    %268 = vector.broadcast %3 : vector<1x32xf32> to vector<8x32xf32>
    %269 = arith.addf %267, %268 : vector<8x32xf32>
    %270 = math.tanh %269 : vector<8x32xf32>
    %cst = arith.constant dense<0.000000e+00> : vector<32xf32>
    %271 = vector.multi_reduction <add>, %270, %cst [0] : vector<8x32xf32> to vector<32xf32>
    %272 = vector.shape_cast %271 : vector<32xf32> to vector<1x32xf32>
    %cst_8 = arith.constant 8.000000e+00 : f32
    %273 = vector.broadcast %cst_8 : f32 to vector<1x32xf32>
    %274 = arith.divf %272, %273 : vector<1x32xf32>
    %275 = vector.broadcast %274 : vector<1x32xf32> to vector<4x32xf32>
    %276 = arith.mulf %7, %275 : vector<4x32xf32>
    %cst_9 = arith.constant dense<0.000000e+00> : vector<4xf32>
    %277 = vector.multi_reduction <add>, %276, %cst_9 [1] : vector<4x32xf32> to vector<4xf32>
    %278 = vector.shape_cast %277 : vector<4xf32> to vector<4x1xf32>
    %279 = vector.shape_cast %278 : vector<4x1xf32> to vector<4x1xf32>
    %280 = vector.broadcast %279 : vector<4x1xf32> to vector<4x256xf32>
    %cst_10 = arith.constant 1.000000e-01 : f32
    %281 = vector.broadcast %cst_10 : f32 to vector<4x256xf32>
    %282 = arith.addf %280, %281 : vector<4x256xf32>
    %cst_11 = arith.constant 7.000000e-02 : f32
    %283 = vector.broadcast %cst_11 : f32 to vector<4x256xf32>
    %284 = arith.addf %280, %283 : vector<4x256xf32>
    %cst_12 = arith.constant 4.000000e-02 : f32
    %285 = vector.broadcast %cst_12 : f32 to vector<4x256xf32>
    %286 = arith.addf %280, %285 : vector<4x256xf32>
    %cst_13 = arith.constant 0.00999999977 : f32
    %287 = vector.broadcast %cst_13 : f32 to vector<4x256xf32>
    %288 = arith.addf %280, %287 : vector<4x256xf32>
    %289 = vector.extract_strided_slice %5 {offsets = [0, 0], sizes = [4, 1], strides = [1, 1]} : vector<4x4xf32> to vector<4x1xf32>
    %290 = vector.shape_cast %289 : vector<4x1xf32> to vector<4x1xf32>
    %291 = vector.broadcast %290 : vector<4x1xf32> to vector<4x256xf32>
    %292 = vector.extract_strided_slice %5 {offsets = [0, 1], sizes = [4, 1], strides = [1, 1]} : vector<4x4xf32> to vector<4x1xf32>
    %293 = vector.shape_cast %292 : vector<4x1xf32> to vector<4x1xf32>
    %294 = vector.broadcast %293 : vector<4x1xf32> to vector<4x256xf32>
    %295 = vector.extract_strided_slice %5 {offsets = [0, 2], sizes = [4, 1], strides = [1, 1]} : vector<4x4xf32> to vector<4x1xf32>
    %296 = vector.shape_cast %295 : vector<4x1xf32> to vector<4x1xf32>
    %297 = vector.broadcast %296 : vector<4x1xf32> to vector<4x256xf32>
    %298 = vector.extract_strided_slice %5 {offsets = [0, 3], sizes = [4, 1], strides = [1, 1]} : vector<4x4xf32> to vector<4x1xf32>
    %299 = vector.shape_cast %298 : vector<4x1xf32> to vector<4x1xf32>
    %300 = vector.broadcast %299 : vector<4x1xf32> to vector<4x256xf32>
    %c0_14 = arith.constant 0 : index
    %c0_15 = arith.constant 0 : index
    %301 = vector.load %arg2[%c0_14, %c0_15] : memref<4x256xf32, #tpu.memory_space<vmem>>, vector<4x256xf32>
    %cst_16 = arith.constant 1.000000e+00 : f32
    %302 = vector.broadcast %cst_16 : f32 to vector<4x256xf32>
    %303 = arith.mulf %301, %302 : vector<4x256xf32>
    %304 = vector.extract_strided_slice %303 {offsets = [0, 0], sizes = [1, 256], strides = [1, 1]} : vector<4x256xf32> to vector<1x256xf32>
    %305 = vector.shape_cast %304 : vector<1x256xf32> to vector<1x256xf32>
    %306 = vector.broadcast %305 : vector<1x256xf32> to vector<4x256xf32>
    %307 = arith.mulf %291, %306 : vector<4x256xf32>
    %308 = vector.extract_strided_slice %303 {offsets = [1, 0], sizes = [1, 256], strides = [1, 1]} : vector<4x256xf32> to vector<1x256xf32>
    %309 = vector.shape_cast %308 : vector<1x256xf32> to vector<1x256xf32>
    %310 = vector.broadcast %309 : vector<1x256xf32> to vector<4x256xf32>
    %311 = arith.mulf %294, %310 : vector<4x256xf32>
    %312 = arith.addf %307, %311 : vector<4x256xf32>
    %313 = vector.extract_strided_slice %303 {offsets = [2, 0], sizes = [1, 256], strides = [1, 1]} : vector<4x256xf32> to vector<1x256xf32>
    %314 = vector.shape_cast %313 : vector<1x256xf32> to vector<1x256xf32>
    %315 = vector.broadcast %314 : vector<1x256xf32> to vector<4x256xf32>
    %316 = arith.mulf %297, %315 : vector<4x256xf32>
    %317 = arith.addf %312, %316 : vector<4x256xf32>
    %318 = vector.extract_strided_slice %303 {offsets = [3, 0], sizes = [1, 256], strides = [1, 1]} : vector<4x256xf32> to vector<1x256xf32>
    %319 = vector.shape_cast %318 : vector<1x256xf32> to vector<1x256xf32>
    %320 = vector.broadcast %319 : vector<1x256xf32> to vector<4x256xf32>
    %321 = arith.mulf %300, %320 : vector<4x256xf32>
    %322 = arith.addf %317, %321 : vector<4x256xf32>
    %323 = arith.addf %322, %282 : vector<4x256xf32>
    %324 = math.tanh %323 : vector<4x256xf32>
    %cst_17 = arith.constant -3.000000e-01 : f32
    %325 = vector.broadcast %cst_17 : f32 to vector<4x256xf32>
    %326 = arith.mulf %325, %324 : vector<4x256xf32>
    %327 = arith.addf %303, %326 : vector<4x256xf32>
    %328 = vector.extract_strided_slice %327 {offsets = [0, 0], sizes = [1, 256], strides = [1, 1]} : vector<4x256xf32> to vector<1x256xf32>
    %329 = vector.shape_cast %328 : vector<1x256xf32> to vector<1x256xf32>
    %330 = vector.broadcast %329 : vector<1x256xf32> to vector<4x256xf32>
    %331 = arith.mulf %291, %330 : vector<4x256xf32>
    %332 = vector.extract_strided_slice %327 {offsets = [1, 0], sizes = [1, 256], strides = [1, 1]} : vector<4x256xf32> to vector<1x256xf32>
    %333 = vector.shape_cast %332 : vector<1x256xf32> to vector<1x256xf32>
    %334 = vector.broadcast %333 : vector<1x256xf32> to vector<4x256xf32>
    %335 = arith.mulf %294, %334 : vector<4x256xf32>
    %336 = arith.addf %331, %335 : vector<4x256xf32>
    %337 = vector.extract_strided_slice %327 {offsets = [2, 0], sizes = [1, 256], strides = [1, 1]} : vector<4x256xf32> to vector<1x256xf32>
    %338 = vector.shape_cast %337 : vector<1x256xf32> to vector<1x256xf32>
    %339 = vector.broadcast %338 : vector<1x256xf32> to vector<4x256xf32>
    %340 = arith.mulf %297, %339 : vector<4x256xf32>
    %341 = arith.addf %336, %340 : vector<4x256xf32>
    %342 = vector.extract_strided_slice %327 {offsets = [3, 0], sizes = [1, 256], strides = [1, 1]} : vector<4x256xf32> to vector<1x256xf32>
    %343 = vector.shape_cast %342 : vector<1x256xf32> to vector<1x256xf32>
    %344 = vector.broadcast %343 : vector<1x256xf32> to vector<4x256xf32>
    %345 = arith.mulf %300, %344 : vector<4x256xf32>
    %346 = arith.addf %341, %345 : vector<4x256xf32>
    %347 = arith.addf %346, %284 : vector<4x256xf32>
    %348 = math.tanh %347 : vector<4x256xf32>
    %cst_18 = arith.constant -3.000000e-01 : f32
    %349 = vector.broadcast %cst_18 : f32 to vector<4x256xf32>
    %350 = arith.mulf %349, %348 : vector<4x256xf32>
    %351 = arith.addf %327, %350 : vector<4x256xf32>
    %352 = vector.extract_strided_slice %351 {offsets = [0, 0], sizes = [1, 256], strides = [1, 1]} : vector<4x256xf32> to vector<1x256xf32>
    %353 = vector.shape_cast %352 : vector<1x256xf32> to vector<1x256xf32>
    %354 = vector.broadcast %353 : vector<1x256xf32> to vector<4x256xf32>
    %355 = arith.mulf %291, %354 : vector<4x256xf32>
    %356 = vector.extract_strided_slice %351 {offsets = [1, 0], sizes = [1, 256], strides = [1, 1]} : vector<4x256xf32> to vector<1x256xf32>
    %357 = vector.shape_cast %356 : vector<1x256xf32> to vector<1x256xf32>
    %358 = vector.broadcast %357 : vector<1x256xf32> to vector<4x256xf32>
    %359 = arith.mulf %294, %358 : vector<4x256xf32>
    %360 = arith.addf %355, %359 : vector<4x256xf32>
    %361 = vector.extract_strided_slice %351 {offsets = [2, 0], sizes = [1, 256], strides = [1, 1]} : vector<4x256xf32> to vector<1x256xf32>
    %362 = vector.shape_cast %361 : vector<1x256xf32> to vector<1x256xf32>
    %363 = vector.broadcast %362 : vector<1x256xf32> to vector<4x256xf32>
    %364 = arith.mulf %297, %363 : vector<4x256xf32>
    %365 = arith.addf %360, %364 : vector<4x256xf32>
    %366 = vector.extract_strided_slice %351 {offsets = [3, 0], sizes = [1, 256], strides = [1, 1]} : vector<4x256xf32> to vector<1x256xf32>
    %367 = vector.shape_cast %366 : vector<1x256xf32> to vector<1x256xf32>
    %368 = vector.broadcast %367 : vector<1x256xf32> to vector<4x256xf32>
    %369 = arith.mulf %300, %368 : vector<4x256xf32>
    %370 = arith.addf %365, %369 : vector<4x256xf32>
    %371 = arith.addf %370, %286 : vector<4x256xf32>
    %372 = math.tanh %371 : vector<4x256xf32>
    %cst_19 = arith.constant -3.000000e-01 : f32
    %373 = vector.broadcast %cst_19 : f32 to vector<4x256xf32>
    %374 = arith.mulf %373, %372 : vector<4x256xf32>
    %375 = arith.addf %351, %374 : vector<4x256xf32>
    %376 = vector.extract_strided_slice %375 {offsets = [0, 0], sizes = [1, 256], strides = [1, 1]} : vector<4x256xf32> to vector<1x256xf32>
    %377 = vector.shape_cast %376 : vector<1x256xf32> to vector<1x256xf32>
    %378 = vector.broadcast %377 : vector<1x256xf32> to vector<4x256xf32>
    %379 = arith.mulf %291, %378 : vector<4x256xf32>
    %380 = vector.extract_strided_slice %375 {offsets = [1, 0], sizes = [1, 256], strides = [1, 1]} : vector<4x256xf32> to vector<1x256xf32>
    %381 = vector.shape_cast %380 : vector<1x256xf32> to vector<1x256xf32>
    %382 = vector.broadcast %381 : vector<1x256xf32> to vector<4x256xf32>
    %383 = arith.mulf %294, %382 : vector<4x256xf32>
    %384 = arith.addf %379, %383 : vector<4x256xf32>
    %385 = vector.extract_strided_slice %375 {offsets = [2, 0], sizes = [1, 256], strides = [1, 1]} : vector<4x256xf32> to vector<1x256xf32>
    %386 = vector.shape_cast %385 : vector<1x256xf32> to vector<1x256xf32>
    %387 = vector.broadcast %386 : vector<1x256xf32> to vector<4x256xf32>
    %388 = arith.mulf %297, %387 : vector<4x256xf32>
    %389 = arith.addf %384, %388 : vector<4x256xf32>
    %390 = vector.extract_strided_slice %375 {offsets = [3, 0], sizes = [1, 256], strides = [1, 1]} : vector<4x256xf32> to vector<1x256xf32>
    %391 = vector.shape_cast %390 : vector<1x256xf32> to vector<1x256xf32>
    %392 = vector.broadcast %391 : vector<1x256xf32> to vector<4x256xf32>
    %393 = arith.mulf %300, %392 : vector<4x256xf32>
    %394 = arith.addf %389, %393 : vector<4x256xf32>
    %395 = arith.addf %394, %288 : vector<4x256xf32>
    %396 = math.tanh %395 : vector<4x256xf32>
    %cst_20 = arith.constant -1.000000e-01 : f32
    %397 = vector.broadcast %cst_20 : f32 to vector<4x256xf32>
    %398 = arith.mulf %397, %396 : vector<4x256xf32>
    %399 = arith.addf %375, %398 : vector<4x256xf32>
    %cst_21 = arith.constant 5.4899807 : f32
    %400 = vector.broadcast %cst_21 : f32 to vector<4x256xf32>
    %401 = arith.mulf %399, %400 : vector<4x256xf32>
    %402 = vector.extract_strided_slice %9 {offsets = [0, 0], sizes = [3, 1], strides = [1, 1]} : vector<3x4xf32> to vector<3x1xf32>
    %403 = vector.shape_cast %402 : vector<3x1xf32> to vector<3x1xf32>
    %404 = vector.broadcast %403 : vector<3x1xf32> to vector<3x256xf32>
    %405 = vector.extract_strided_slice %401 {offsets = [0, 0], sizes = [1, 256], strides = [1, 1]} : vector<4x256xf32> to vector<1x256xf32>
    %406 = vector.shape_cast %405 : vector<1x256xf32> to vector<1x256xf32>
    %407 = vector.broadcast %406 : vector<1x256xf32> to vector<3x256xf32>
    %408 = arith.mulf %404, %407 : vector<3x256xf32>
    %409 = vector.extract_strided_slice %9 {offsets = [0, 1], sizes = [3, 1], strides = [1, 1]} : vector<3x4xf32> to vector<3x1xf32>
    %410 = vector.shape_cast %409 : vector<3x1xf32> to vector<3x1xf32>
    %411 = vector.broadcast %410 : vector<3x1xf32> to vector<3x256xf32>
    %412 = vector.extract_strided_slice %401 {offsets = [1, 0], sizes = [1, 256], strides = [1, 1]} : vector<4x256xf32> to vector<1x256xf32>
    %413 = vector.shape_cast %412 : vector<1x256xf32> to vector<1x256xf32>
    %414 = vector.broadcast %413 : vector<1x256xf32> to vector<3x256xf32>
    %415 = arith.mulf %411, %414 : vector<3x256xf32>
    %416 = arith.addf %408, %415 : vector<3x256xf32>
    %417 = vector.extract_strided_slice %9 {offsets = [0, 2], sizes = [3, 1], strides = [1, 1]} : vector<3x4xf32> to vector<3x1xf32>
    %418 = vector.shape_cast %417 : vector<3x1xf32> to vector<3x1xf32>
    %419 = vector.broadcast %418 : vector<3x1xf32> to vector<3x256xf32>
    %420 = vector.extract_strided_slice %401 {offsets = [2, 0], sizes = [1, 256], strides = [1, 1]} : vector<4x256xf32> to vector<1x256xf32>
    %421 = vector.shape_cast %420 : vector<1x256xf32> to vector<1x256xf32>
    %422 = vector.broadcast %421 : vector<1x256xf32> to vector<3x256xf32>
    %423 = arith.mulf %419, %422 : vector<3x256xf32>
    %424 = arith.addf %416, %423 : vector<3x256xf32>
    %425 = vector.extract_strided_slice %9 {offsets = [0, 3], sizes = [3, 1], strides = [1, 1]} : vector<3x4xf32> to vector<3x1xf32>
    %426 = vector.shape_cast %425 : vector<3x1xf32> to vector<3x1xf32>
    %427 = vector.broadcast %426 : vector<3x1xf32> to vector<3x256xf32>
    %428 = vector.extract_strided_slice %401 {offsets = [3, 0], sizes = [1, 256], strides = [1, 1]} : vector<4x256xf32> to vector<1x256xf32>
    %429 = vector.shape_cast %428 : vector<1x256xf32> to vector<1x256xf32>
    %430 = vector.broadcast %429 : vector<1x256xf32> to vector<3x256xf32>
    %431 = arith.mulf %427, %430 : vector<3x256xf32>
    %432 = arith.addf %424, %431 : vector<3x256xf32>
    %433 = vector.broadcast %11 : vector<3x1xf32> to vector<3x256xf32>
    %434 = arith.addf %432, %433 : vector<3x256xf32>
    %435 = math.tanh %434 : vector<3x256xf32>
    %cst_22 = arith.constant 5.000000e-01 : f32
    %436 = vector.broadcast %cst_22 : f32 to vector<3x256xf32>
    %437 = arith.mulf %435, %436 : vector<3x256xf32>
    %cst_23 = arith.constant 5.000000e-01 : f32
    %438 = vector.broadcast %cst_23 : f32 to vector<3x256xf32>
    %439 = arith.addf %437, %438 : vector<3x256xf32>
    %cst_24 = arith.constant 0.000000e+00 : f32
    %cst_25 = arith.constant 1.000000e+00 : f32
    %440 = vector.broadcast %cst_24 : f32 to vector<3x256xf32>
    %441 = arith.maximumf %440, %439 : vector<3x256xf32>
    %442 = vector.broadcast %cst_25 : f32 to vector<3x256xf32>
    %443 = arith.minimumf %442, %441 : vector<3x256xf32>
    %c0_26 = arith.constant 0 : index
    %c0_27 = arith.constant 0 : index
    %444 = vector.load %arg3[%c0_26, %c0_27] : memref<3x256xf32, #tpu.memory_space<vmem>>, vector<3x256xf32>
    tpu.vector_store %arg3[%c0_26, %c0_27], %443 {strides = array<i32>} : memref<3x256xf32, #tpu.memory_space<vmem>>, vector<3x256xf32>,
    return
  }
}

</mosaic_0001>

<llo_original>
// kernel: tpu_custom_call.1
$region0: #{tpu_custom_call.1}
  #allocation0 [shape = 'u32[]', space=smem, size = 0x4, offset = 0x4, fixed_abs, tag = 'smem constant byte address 0x4 - core index']
  #allocation1 [shape = 'u32[144,128]{1,0:T(1,128)}', space=vmem, size = 0x12000, scoped, tag = 'internal scratch']
  %s0 = inlined_call_operand.hbm [shape: f32[72,128], index: 0, kind: input, shape index: {}]
  %s1 = inlined_call_operand.hbm [shape: f32[8,32], index: 1, kind: input, shape index: {}]
  %s2 = inlined_call_operand.hbm [shape: f32[4,256], index: 2, kind: input, shape index: {}]
  %s3 = inlined_call_operand.hbm [shape: f32[3,256], index: 3, kind: output, shape index: {}]
  %s4 = sld [smem:[#allocation0]]
  $region34: #{tpu_custom_call.1} parent=0
    _
  %s6 = ssub.s32 1, %s4
  %s7 = scalar_select 0, %s6, %s4
  $region1: #{tpu_custom_call.1} parent=0
    #allocation2 [shape = 'u8[36864]{0}', space=vmem, size = 0x9000, scoped, tag = 'input window, operand 0, single buffered']
    #allocation3 [shape = 's32[1]{0}', space=sflag, size = 0x4, scoped, tag = 'scoped memory for tpu_custom_call.1']
    #allocation4 [shape = 's32[1]{0}', space=sflag, size = 0x4, scoped, tag = 'scoped memory for tpu_custom_call.1']
    #allocation5 [shape = 'u8[4096]{0}', space=vmem, size = 0x1000, scoped, tag = 'input window, operand 1, single buffered']
    #allocation6 [shape = 's32[1]{0}', space=sflag, size = 0x4, scoped, tag = 'scoped memory for tpu_custom_call.1']
    #allocation7 [shape = 'u8[4096]{0}', space=vmem, size = 0x1000, scoped, tag = 'input window, operand 2, single buffered']
    #allocation8 [shape = 'u8[4096]{0}', space=vmem, size = 0x1000, scoped, tag = 'output window, operand 0, single buffered']
    %8 = vsyncpa [#allocation3], 0
    %9 = vsyncpa [#allocation6], 0
    %10 = vsyncpa [#allocation4], 0
    // Predicated region
    $region2: #{tpu_custom_call.1} parent=1 // pred_check
      _
    $region3: #{tpu_custom_call.1} parent=1 // pred_check_branch
      %12 = sbr.rel (0) target = $region5
    $region4: #{tpu_custom_call.1} parent=1 // pred_region
      %s14 = ssub.s32 1152, 1152
      %15 = vsyncadd [#allocation3], %s14
      %s16 = sshll.u32 [#allocation2], 4
      %s17 = int_to_ptr.vmem [resolvable:$true] %s16
      %22 = dma.hbm_to_vmem [thread:$0]  %s0, 1152, %s17, [#allocation3], 128, 128, 8
    $region5: #{tpu_custom_call.1} parent=1 // pred_fallthru
      _
    // Predicated region
    $region6: #{tpu_custom_call.1} parent=1 // pred_check
      _
    $region7: #{tpu_custom_call.1} parent=1 // pred_check_branch
      %24 = sbr.rel (0) target = $region9
    $region8: #{tpu_custom_call.1} parent=1 // pred_region
      %s26 = ssub.s32 128, 128
      %27 = vsyncadd [#allocation6], %s26
      %s29 = sshll.u32 [#allocation5], 4
      %s30 = int_to_ptr.vmem [resolvable:$true] %s29
      %32 = dma.hbm_to_vmem [thread:$0]  %s1, 128, %s30, [#allocation6]
    $region9: #{tpu_custom_call.1} parent=1 // pred_fallthru
      _
    // Predicated region
    $region10: #{tpu_custom_call.1} parent=1 // pred_check
      _
    $region11: #{tpu_custom_call.1} parent=1 // pred_check_branch
      %34 = sbr.rel (0) target = $region13
    $region12: #{tpu_custom_call.1} parent=1 // pred_region
      %s36 = ssub.s32 128, 128
      %37 = vsyncadd [#allocation6], %s36
      %s39 = sshll.u32 [#allocation7], 4
      %s40 = int_to_ptr.vmem [resolvable:$true] %s39
      %42 = dma.hbm_to_vmem [thread:$0]  %s2, 128, %s40, [#allocation6]
    $region13: #{tpu_custom_call.1} parent=1 // pred_fallthru
      _
    // Predicated region
    $region14: #{tpu_custom_call.1} parent=1 // pred_check
      _
    $region15: #{tpu_custom_call.1} parent=1 // pred_check_branch
      %44 = sbr.rel (0) target = $region17
    $region16: #{tpu_custom_call.1} parent=1 // pred_region
      %45 = dma.done [#allocation3], 1152
    $region17: #{tpu_custom_call.1} parent=1 // pred_fallthru
      _
    // Predicated region
    $region18: #{tpu_custom_call.1} parent=1 // pred_check
      _
    $region19: #{tpu_custom_call.1} parent=1 // pred_check_branch
      %47 = sbr.rel (0) target = $region21
    $region20: #{tpu_custom_call.1} parent=1 // pred_region
      %48 = dma.done [#allocation6], 128
    $region21: #{tpu_custom_call.1} parent=1 // pred_fallthru
      _
    // Predicated region
    $region22: #{tpu_custom_call.1} parent=1 // pred_check
      _
    $region23: #{tpu_custom_call.1} parent=1 // pred_check_branch
      %50 = sbr.rel (0) target = $region25
    $region24: #{tpu_custom_call.1} parent=1 // pred_region
      %51 = dma.done [#allocation6], 128
    $region25: #{tpu_custom_call.1} parent=1 // pred_fallthru
      _
    %v52 = vld [vmem:[#allocation2] sm:$0xff]
    %v53 = vld [vmem:[#allocation2 + $0x8] sm:$0xff]
    %v54 = vld [vmem:[#allocation2 + $0x10] sm:$0xff]
    %v55 = vld [vmem:[#allocation2 + $0x18] sm:$0xff]
    %v56 = vld [vmem:[#allocation2 + $0x20] sm:$0x1]
    %v57 = vld [vmem:[#allocation2 + $0x28] sm:$0xf]
    %v58 = vld [vmem:[#allocation2 + $0x30] sm:$0xf]
    %v59 = vld [vmem:[#allocation2 + $0x38] sm:$0x7]
    %v60 = vld [vmem:[#allocation2 + $0x40] sm:$0x7]
    %v61 = vld [vmem:[#allocation5] sm:$0xff]
    %63 = vset.pattern.permute.xlu0 0
    %64 = vperm.xlu0 %63, %v61
    %v65 = vpop.permute.xlu0 %64
    %v67 = vlaneseq
    %v68 = vshrl.u32 %v67, 7
    %v69 = vsub.s32 0, %v68
    %v70 = vrot.slane %v52, %v69
    %v71 = vmul.f32 %v65, %v70
    %72 = vset.pattern.permute.xlu0 1
    %73 = vperm.xlu0 %72, %v61
    %v74 = vpop.permute.xlu0 %73
    %v76 = vlaneseq
    %v77 = vshrl.u32 %v76, 7
    %v78 = vsub.s32 1, %v77
    %v79 = vrot.slane %v52, %v78
    %v80 = vmul.f32 %v74, %v79
    %v81 = vadd.f32 %v71, %v80
    %82 = vset.pattern.permute.xlu0 2
    %83 = vperm.xlu0 %82, %v61
    %v84 = vpop.permute.xlu0 %83
    %v86 = vlaneseq
    %v87 = vshrl.u32 %v86, 7
    %v88 = vsub.s32 2, %v87
    %v89 = vrot.slane %v52, %v88
    %v90 = vmul.f32 %v84, %v89
    %v91 = vadd.f32 %v81, %v90
    %92 = vset.pattern.permute.xlu0 3
    %93 = vperm.xlu0 %92, %v61
    %v94 = vpop.permute.xlu0 %93
    %v96 = vlaneseq
    %v97 = vshrl.u32 %v96, 7
    %v98 = vsub.s32 3, %v97
    %v99 = vrot.slane %v52, %v98
    %v100 = vmul.f32 %v94, %v99
    %v101 = vadd.f32 %v91, %v100
    %102 = vset.pattern.permute.xlu0 4
    %103 = vperm.xlu0 %102, %v61
    %v104 = vpop.permute.xlu0 %103
    %v106 = vlaneseq
    %v107 = vshrl.u32 %v106, 7
    %v108 = vsub.s32 4, %v107
    %v109 = vrot.slane %v52, %v108
    %v110 = vmul.f32 %v104, %v109
    %v111 = vadd.f32 %v101, %v110
    %112 = vset.pattern.permute.xlu0 5
    %113 = vperm.xlu0 %112, %v61
    %v114 = vpop.permute.xlu0 %113
    %v116 = vlaneseq
    %v117 = vshrl.u32 %v116, 7
    %v118 = vsub.s32 5, %v117
    %v119 = vrot.slane %v52, %v118
    %v120 = vmul.f32 %v114, %v119
    %v121 = vadd.f32 %v111, %v120
    %122 = vset.pattern.permute.xlu0 6
    %123 = vperm.xlu0 %122, %v61
    %v124 = vpop.permute.xlu0 %123
    %v126 = vlaneseq
    %v127 = vshrl.u32 %v126, 7
    %v128 = vsub.s32 6, %v127
    %v129 = vrot.slane %v52, %v128
    %v130 = vmul.f32 %v124, %v129
    %v131 = vadd.f32 %v121, %v130
    %132 = vset.pattern.permute.xlu0 7
    %133 = vperm.xlu0 %132, %v61
    %v134 = vpop.permute.xlu0 %133
    %v136 = vlaneseq
    %v137 = vshrl.u32 %v136, 7
    %v138 = vsub.s32 7, %v137
    %v139 = vrot.slane %v52, %v138
    %v140 = vmul.f32 %v134, %v139
    %v141 = vadd.f32 %v131, %v140
    %142 = vset.pattern.permute.xlu0 8
    %143 = vperm.xlu0 %142, %v61
    %v144 = vpop.permute.xlu0 %143
    %v146 = vlaneseq
    %v147 = vshrl.u32 %v146, 7
    %v148 = vsub.s32 0, %v147
    %v149 = vrot.slane %v53, %v148
    %v150 = vmul.f32 %v144, %v149
    %v151 = vadd.f32 %v141, %v150
    %152 = vset.pattern.permute.xlu0 9
    %153 = vperm.xlu0 %152, %v61
    %v154 = vpop.permute.xlu0 %153
    %v156 = vlaneseq
    %v157 = vshrl.u32 %v156, 7
    %v158 = vsub.s32 1, %v157
    %v159 = vrot.slane %v53, %v158
    %v160 = vmul.f32 %v154, %v159
    %v161 = vadd.f32 %v151, %v160
    %162 = vset.pattern.permute.xlu0 10
    %163 = vperm.xlu0 %162, %v61
    %v164 = vpop.permute.xlu0 %163
    %v166 = vlaneseq
    %v167 = vshrl.u32 %v166, 7
    %v168 = vsub.s32 2, %v167
    %v169 = vrot.slane %v53, %v168
    %v170 = vmul.f32 %v164, %v169
    %v171 = vadd.f32 %v161, %v170
    %172 = vset.pattern.permute.xlu0 11
    %173 = vperm.xlu0 %172, %v61
    %v174 = vpop.permute.xlu0 %173
    %v176 = vlaneseq
    %v177 = vshrl.u32 %v176, 7
    %v178 = vsub.s32 3, %v177
    %v179 = vrot.slane %v53, %v178
    %v180 = vmul.f32 %v174, %v179
    %v181 = vadd.f32 %v171, %v180
    %182 = vset.pattern.permute.xlu0 12
    %183 = vperm.xlu0 %182, %v61
    %v184 = vpop.permute.xlu0 %183
    %v186 = vlaneseq
    %v187 = vshrl.u32 %v186, 7
    %v188 = vsub.s32 4, %v187
    %v189 = vrot.slane %v53, %v188
    %v190 = vmul.f32 %v184, %v189
    %v191 = vadd.f32 %v181, %v190
    %192 = vset.pattern.permute.xlu0 13
    %193 = vperm.xlu0 %192, %v61
    %v194 = vpop.permute.xlu0 %193
    %v196 = vlaneseq
    %v197 = vshrl.u32 %v196, 7
    %v198 = vsub.s32 5, %v197
    %v199 = vrot.slane %v53, %v198
    %v200 = vmul.f32 %v194, %v199
    %v201 = vadd.f32 %v191, %v200
    %202 = vset.pattern.permute.xlu0 14
    %203 = vperm.xlu0 %202, %v61
    %v204 = vpop.permute.xlu0 %203
    %v206 = vlaneseq
    %v207 = vshrl.u32 %v206, 7
    %v208 = vsub.s32 6, %v207
    %v209 = vrot.slane %v53, %v208
    %v210 = vmul.f32 %v204, %v209
    %v211 = vadd.f32 %v201, %v210
    %212 = vset.pattern.permute.xlu0 15
    %213 = vperm.xlu0 %212, %v61
    %v214 = vpop.permute.xlu0 %213
    %v216 = vlaneseq
    %v217 = vshrl.u32 %v216, 7
    %v218 = vsub.s32 7, %v217
    %v219 = vrot.slane %v53, %v218
    %v220 = vmul.f32 %v214, %v219
    %v221 = vadd.f32 %v211, %v220
    %222 = vset.pattern.permute.xlu0 16
    %223 = vperm.xlu0 %222, %v61
    %v224 = vpop.permute.xlu0 %223
    %v226 = vlaneseq
    %v227 = vshrl.u32 %v226, 7
    %v228 = vsub.s32 0, %v227
    %v229 = vrot.slane %v54, %v228
    %v230 = vmul.f32 %v224, %v229
    %v231 = vadd.f32 %v221, %v230
    %232 = vset.pattern.permute.xlu0 17
    %233 = vperm.xlu0 %232, %v61
    %v234 = vpop.permute.xlu0 %233
    %v236 = vlaneseq
    %v237 = vshrl.u32 %v236, 7
    %v238 = vsub.s32 1, %v237
    %v239 = vrot.slane %v54, %v238
    %v240 = vmul.f32 %v234, %v239
    %v241 = vadd.f32 %v231, %v240
    %242 = vset.pattern.permute.xlu0 18
    %243 = vperm.xlu0 %242, %v61
    %v244 = vpop.permute.xlu0 %243
    %v246 = vlaneseq
    %v247 = vshrl.u32 %v246, 7
    %v248 = vsub.s32 2, %v247
    %v249 = vrot.slane %v54, %v248
    %v250 = vmul.f32 %v244, %v249
    %v251 = vadd.f32 %v241, %v250
    %252 = vset.pattern.permute.xlu0 19
    %253 = vperm.xlu0 %252, %v61
    %v254 = vpop.permute.xlu0 %253
    %v256 = vlaneseq
    %v257 = vshrl.u32 %v256, 7
    %v258 = vsub.s32 3, %v257
    %v259 = vrot.slane %v54, %v258
    %v260 = vmul.f32 %v254, %v259
    %v261 = vadd.f32 %v251, %v260
    %262 = vset.pattern.permute.xlu0 20
    %263 = vperm.xlu0 %262, %v61
    %v264 = vpop.permute.xlu0 %263
    %v266 = vlaneseq
    %v267 = vshrl.u32 %v266, 7
    %v268 = vsub.s32 4, %v267
    %v269 = vrot.slane %v54, %v268
    %v270 = vmul.f32 %v264, %v269
    %v271 = vadd.f32 %v261, %v270
    %272 = vset.pattern.permute.xlu0 21
    %273 = vperm.xlu0 %272, %v61
    %v274 = vpop.permute.xlu0 %273
    %v276 = vlaneseq
    %v277 = vshrl.u32 %v276, 7
    %v278 = vsub.s32 5, %v277
    %v279 = vrot.slane %v54, %v278
    %v280 = vmul.f32 %v274, %v279
    %v281 = vadd.f32 %v271, %v280
    %282 = vset.pattern.permute.xlu0 22
    %283 = vperm.xlu0 %282, %v61
    %v284 = vpop.permute.xlu0 %283
    %v286 = vlaneseq
    %v287 = vshrl.u32 %v286, 7
    %v288 = vsub.s32 6, %v287
    %v289 = vrot.slane %v54, %v288
    %v290 = vmul.f32 %v284, %v289
    %v291 = vadd.f32 %v281, %v290
    %292 = vset.pattern.permute.xlu0 23
    %293 = vperm.xlu0 %292, %v61
    %v294 = vpop.permute.xlu0 %293
    %v296 = vlaneseq
    %v297 = vshrl.u32 %v296, 7
    %v298 = vsub.s32 7, %v297
    %v299 = vrot.slane %v54, %v298
    %v300 = vmul.f32 %v294, %v299
    %v301 = vadd.f32 %v291, %v300
    %302 = vset.pattern.permute.xlu0 24
    %303 = vperm.xlu0 %302, %v61
    %v304 = vpop.permute.xlu0 %303
    %v306 = vlaneseq
    %v307 = vshrl.u32 %v306, 7
    %v308 = vsub.s32 0, %v307
    %v309 = vrot.slane %v55, %v308
    %v310 = vmul.f32 %v304, %v309
    %v311 = vadd.f32 %v301, %v310
    %312 = vset.pattern.permute.xlu0 25
    %313 = vperm.xlu0 %312, %v61
    %v314 = vpop.permute.xlu0 %313
    %v316 = vlaneseq
    %v317 = vshrl.u32 %v316, 7
    %v318 = vsub.s32 1, %v317
    %v319 = vrot.slane %v55, %v318
    %v320 = vmul.f32 %v314, %v319
    %v321 = vadd.f32 %v311, %v320
    %322 = vset.pattern.permute.xlu0 26
    %323 = vperm.xlu0 %322, %v61
    %v324 = vpop.permute.xlu0 %323
    %v326 = vlaneseq
    %v327 = vshrl.u32 %v326, 7
    %v328 = vsub.s32 2, %v327
    %v329 = vrot.slane %v55, %v328
    %v330 = vmul.f32 %v324, %v329
    %v331 = vadd.f32 %v321, %v330
    %332 = vset.pattern.permute.xlu0 27
    %333 = vperm.xlu0 %332, %v61
    %v334 = vpop.permute.xlu0 %333
    %v336 = vlaneseq
    %v337 = vshrl.u32 %v336, 7
    %v338 = vsub.s32 3, %v337
    %v339 = vrot.slane %v55, %v338
    %v340 = vmul.f32 %v334, %v339
    %v341 = vadd.f32 %v331, %v340
    %342 = vset.pattern.permute.xlu0 28
    %343 = vperm.xlu0 %342, %v61
    %v344 = vpop.permute.xlu0 %343
    %v346 = vlaneseq
    %v347 = vshrl.u32 %v346, 7
    %v348 = vsub.s32 4, %v347
    %v349 = vrot.slane %v55, %v348
    %v350 = vmul.f32 %v344, %v349
    %v351 = vadd.f32 %v341, %v350
    %352 = vset.pattern.permute.xlu0 29
    %353 = vperm.xlu0 %352, %v61
    %v354 = vpop.permute.xlu0 %353
    %v356 = vlaneseq
    %v357 = vshrl.u32 %v356, 7
    %v358 = vsub.s32 5, %v357
    %v359 = vrot.slane %v55, %v358
    %v360 = vmul.f32 %v354, %v359
    %v361 = vadd.f32 %v351, %v360
    %362 = vset.pattern.permute.xlu0 30
    %363 = vperm.xlu0 %362, %v61
    %v364 = vpop.permute.xlu0 %363
    %v366 = vlaneseq
    %v367 = vshrl.u32 %v366, 7
    %v368 = vsub.s32 6, %v367
    %v369 = vrot.slane %v55, %v368
    %v370 = vmul.f32 %v364, %v369
    %v371 = vadd.f32 %v361, %v370
    %372 = vset.pattern.permute.xlu0 31
    %373 = vperm.xlu0 %372, %v61
    %v374 = vpop.permute.xlu0 %373
    %v376 = vlaneseq
    %v377 = vshrl.u32 %v376, 7
    %v378 = vsub.s32 7, %v377
    %v379 = vrot.slane %v55, %v378
    %v380 = vmul.f32 %v374, %v379
    %v381 = vadd.f32 %v371, %v380
    %v382 = vlaneseq
    %v383 = vshrl.u32 %v382, 7
    %v384 = vsub.s32 0, %v383
    %v385 = vrot.slane %v56, %v384
    %v386 = vadd.f32 %v381, %v385
    %v387 = vtanh.pop %v386
    %vm388 = vcmask 261120
    %v389 = vsel %vm388, %v387, 0.0
    %v390 = vrot.slane %v389, 4
    %v391 = vadd.f32 %v389, %v390
    %v392 = vrot.slane %v391, 2
    %v393 = vadd.f32 %v391, %v392
    %v394 = vrot.slane %v393, 1
    %v395 = vadd.f32 %v393, %v394
    %v396 = vrcp.pop 8.0
    %v397 = vmul.f32 %v395, %v396
    %v398 = vmul.f32 %v58, %v397
    %vm399 = vcmask 257024
    %v400 = vsel %vm399, %v398, 0.0
    %401 = vadd.xlane.f32.xlu0 %v400
    %v402 = vpop.xlane.xlu0 %401
    %v403 = vadd.f32 %v402, 0.1
    %v404 = vadd.f32 %v402, 0.07
    %v405 = vadd.f32 %v402, 0.04
    %v406 = vadd.f32 %v402, 0.01
    %408 = vset.pattern.permute.xlu0 0
    %409 = vperm.xlu0 %408, %v57
    %v410 = vpop.permute.xlu0 %409
    %412 = vset.pattern.permute.xlu0 1
    %413 = vperm.xlu0 %412, %v57
    %v414 = vpop.permute.xlu0 %413
    %416 = vset.pattern.permute.xlu0 2
    %417 = vperm.xlu0 %416, %v57
    %v418 = vpop.permute.xlu0 %417
    %420 = vset.pattern.permute.xlu0 3
    %421 = vperm.xlu0 %420, %v57
    %v422 = vpop.permute.xlu0 %421
    %v424 = vld [vmem:[#allocation7] sm:$0xff]
    %v426 = vlaneseq
    %v427 = vshrl.u32 %v426, 7
    %v428 = vsub.s32 0, %v427
    %v429 = vrot.slane %v424, %v428
    %v430 = vlaneseq
    %v431 = vshrl.u32 %v430, 7
    %v432 = vsub.s32 4, %v431
    %v433 = vrot.slane %v424, %v432
    %v436 = vlaneseq
    %v437 = vshrl.u32 %v436, 7
    %v438 = vsub.s32 0, %v437
    %v439 = vrot.slane %v429, %v438
    %v440 = vlaneseq
    %v441 = vshrl.u32 %v440, 7
    %v442 = vsub.s32 0, %v441
    %v443 = vrot.slane %v433, %v442
    %v444 = vmul.f32 %v410, %v439
    %v445 = vmul.f32 %v410, %v443
    %v446 = vlaneseq
    %v447 = vshrl.u32 %v446, 7
    %v448 = vsub.s32 1, %v447
    %v449 = vrot.slane %v424, %v448
    %v450 = vlaneseq
    %v451 = vshrl.u32 %v450, 7
    %v452 = vsub.s32 5, %v451
    %v453 = vrot.slane %v424, %v452
    %v456 = vlaneseq
    %v457 = vshrl.u32 %v456, 7
    %v458 = vsub.s32 1, %v457
    %v459 = vrot.slane %v449, %v458
    %v460 = vlaneseq
    %v461 = vshrl.u32 %v460, 7
    %v462 = vsub.s32 1, %v461
    %v463 = vrot.slane %v453, %v462
    %v464 = vmul.f32 %v414, %v459
    %v465 = vmul.f32 %v414, %v463
    %v466 = vadd.f32 %v444, %v464
    %v467 = vadd.f32 %v445, %v465
    %v468 = vlaneseq
    %v469 = vshrl.u32 %v468, 7
    %v470 = vsub.s32 2, %v469
    %v471 = vrot.slane %v424, %v470
    %v472 = vlaneseq
    %v473 = vshrl.u32 %v472, 7
    %v474 = vsub.s32 6, %v473
    %v475 = vrot.slane %v424, %v474
    %v478 = vlaneseq
    %v479 = vshrl.u32 %v478, 7
    %v480 = vsub.s32 2, %v479
    %v481 = vrot.slane %v471, %v480
    %v482 = vlaneseq
    %v483 = vshrl.u32 %v482, 7
    %v484 = vsub.s32 2, %v483
    %v485 = vrot.slane %v475, %v484
    %v486 = vmul.f32 %v418, %v481
    %v487 = vmul.f32 %v418, %v485
    %v488 = vadd.f32 %v466, %v486
    %v489 = vadd.f32 %v467, %v487
    %v490 = vlaneseq
    %v491 = vshrl.u32 %v490, 7
    %v492 = vsub.s32 3, %v491
    %v493 = vrot.slane %v424, %v492
    %v494 = vlaneseq
    %v495 = vshrl.u32 %v494, 7
    %v496 = vsub.s32 7, %v495
    %v497 = vrot.slane %v424, %v496
    %v500 = vlaneseq
    %v501 = vshrl.u32 %v500, 7
    %v502 = vsub.s32 3, %v501
    %v503 = vrot.slane %v493, %v502
    %v504 = vlaneseq
    %v505 = vshrl.u32 %v504, 7
    %v506 = vsub.s32 3, %v505
    %v507 = vrot.slane %v497, %v506
    %v508 = vmul.f32 %v422, %v503
    %v509 = vmul.f32 %v422, %v507
    %v510 = vadd.f32 %v488, %v508
    %v511 = vadd.f32 %v489, %v509
    %v512 = vadd.f32 %v510, %v403
    %v513 = vadd.f32 %v511, %v403
    %v514 = vtanh.pop %v512
    %v515 = vtanh.pop %v513
    %v516 = vmul.f32 %v514, -0.3
    %v517 = vmul.f32 %v515, -0.3
    %v520 = vcombine.low %v516, %v517
    %v522 = vadd.f32 %v424, %v520
    %v524 = vlaneseq
    %v525 = vshrl.u32 %v524, 7
    %v526 = vsub.s32 0, %v525
    %v527 = vrot.slane %v522, %v526
    %v528 = vlaneseq
    %v529 = vshrl.u32 %v528, 7
    %v530 = vsub.s32 4, %v529
    %v531 = vrot.slane %v522, %v530
    %v534 = vlaneseq
    %v535 = vshrl.u32 %v534, 7
    %v536 = vsub.s32 0, %v535
    %v537 = vrot.slane %v527, %v536
    %v538 = vlaneseq
    %v539 = vshrl.u32 %v538, 7
    %v540 = vsub.s32 0, %v539
    %v541 = vrot.slane %v531, %v540
    %v542 = vmul.f32 %v410, %v537
    %v543 = vmul.f32 %v410, %v541
    %v544 = vlaneseq
    %v545 = vshrl.u32 %v544, 7
    %v546 = vsub.s32 1, %v545
    %v547 = vrot.slane %v522, %v546
    %v548 = vlaneseq
    %v549 = vshrl.u32 %v548, 7
    %v550 = vsub.s32 5, %v549
    %v551 = vrot.slane %v522, %v550
    %v554 = vlaneseq
    %v555 = vshrl.u32 %v554, 7
    %v556 = vsub.s32 1, %v555
    %v557 = vrot.slane %v547, %v556
    %v558 = vlaneseq
    %v559 = vshrl.u32 %v558, 7
    %v560 = vsub.s32 1, %v559
    %v561 = vrot.slane %v551, %v560
    %v562 = vmul.f32 %v414, %v557
    %v563 = vmul.f32 %v414, %v561
    %v564 = vadd.f32 %v542, %v562
    %v565 = vadd.f32 %v543, %v563
    %v566 = vlaneseq
    %v567 = vshrl.u32 %v566, 7
    %v568 = vsub.s32 2, %v567
    %v569 = vrot.slane %v522, %v568
    %v570 = vlaneseq
    %v571 = vshrl.u32 %v570, 7
    %v572 = vsub.s32 6, %v571
    %v573 = vrot.slane %v522, %v572
    %v576 = vlaneseq
    %v577 = vshrl.u32 %v576, 7
    %v578 = vsub.s32 2, %v577
    %v579 = vrot.slane %v569, %v578
    %v580 = vlaneseq
    %v581 = vshrl.u32 %v580, 7
    %v582 = vsub.s32 2, %v581
    %v583 = vrot.slane %v573, %v582
    %v584 = vmul.f32 %v418, %v579
    %v585 = vmul.f32 %v418, %v583
    %v586 = vadd.f32 %v564, %v584
    %v587 = vadd.f32 %v565, %v585
    %v588 = vlaneseq
    %v589 = vshrl.u32 %v588, 7
    %v590 = vsub.s32 3, %v589
    %v591 = vrot.slane %v522, %v590
    %v592 = vlaneseq
    %v593 = vshrl.u32 %v592, 7
    %v594 = vsub.s32 7, %v593
    %v595 = vrot.slane %v522, %v594
    %v598 = vlaneseq
    %v599 = vshrl.u32 %v598, 7
    %v600 = vsub.s32 3, %v599
    %v601 = vrot.slane %v591, %v600
    %v602 = vlaneseq
    %v603 = vshrl.u32 %v602, 7
    %v604 = vsub.s32 3, %v603
    %v605 = vrot.slane %v595, %v604
    %v606 = vmul.f32 %v422, %v601
    %v607 = vmul.f32 %v422, %v605
    %v608 = vadd.f32 %v586, %v606
    %v609 = vadd.f32 %v587, %v607
    %v610 = vadd.f32 %v608, %v404
    %v611 = vadd.f32 %v609, %v404
    %v612 = vtanh.pop %v610
    %v613 = vtanh.pop %v611
    %v614 = vmul.f32 %v612, -0.3
    %v615 = vmul.f32 %v613, -0.3
    %v618 = vcombine.low %v614, %v615
    %v620 = vadd.f32 %v522, %v618
    %v622 = vlaneseq
    %v623 = vshrl.u32 %v622, 7
    %v624 = vsub.s32 0, %v623
    %v625 = vrot.slane %v620, %v624
    %v626 = vlaneseq
    %v627 = vshrl.u32 %v626, 7
    %v628 = vsub.s32 4, %v627
    %v629 = vrot.slane %v620, %v628
    %v632 = vlaneseq
    %v633 = vshrl.u32 %v632, 7
    %v634 = vsub.s32 0, %v633
    %v635 = vrot.slane %v625, %v634
    %v636 = vlaneseq
    %v637 = vshrl.u32 %v636, 7
    %v638 = vsub.s32 0, %v637
    %v639 = vrot.slane %v629, %v638
    %v640 = vmul.f32 %v410, %v635
    %v641 = vmul.f32 %v410, %v639
    %v642 = vlaneseq
    %v643 = vshrl.u32 %v642, 7
    %v644 = vsub.s32 1, %v643
    %v645 = vrot.slane %v620, %v644
    %v646 = vlaneseq
    %v647 = vshrl.u32 %v646, 7
    %v648 = vsub.s32 5, %v647
    %v649 = vrot.slane %v620, %v648
    %v652 = vlaneseq
    %v653 = vshrl.u32 %v652, 7
    %v654 = vsub.s32 1, %v653
    %v655 = vrot.slane %v645, %v654
    %v656 = vlaneseq
    %v657 = vshrl.u32 %v656, 7
    %v658 = vsub.s32 1, %v657
    %v659 = vrot.slane %v649, %v658
    %v660 = vmul.f32 %v414, %v655
    %v661 = vmul.f32 %v414, %v659
    %v662 = vadd.f32 %v640, %v660
    %v663 = vadd.f32 %v641, %v661
    %v664 = vlaneseq
    %v665 = vshrl.u32 %v664, 7
    %v666 = vsub.s32 2, %v665
    %v667 = vrot.slane %v620, %v666
    %v668 = vlaneseq
    %v669 = vshrl.u32 %v668, 7
    %v670 = vsub.s32 6, %v669
    %v671 = vrot.slane %v620, %v670
    %v674 = vlaneseq
    %v675 = vshrl.u32 %v674, 7
    %v676 = vsub.s32 2, %v675
    %v677 = vrot.slane %v667, %v676
    %v678 = vlaneseq
    %v679 = vshrl.u32 %v678, 7
    %v680 = vsub.s32 2, %v679
    %v681 = vrot.slane %v671, %v680
    %v682 = vmul.f32 %v418, %v677
    %v683 = vmul.f32 %v418, %v681
    %v684 = vadd.f32 %v662, %v682
    %v685 = vadd.f32 %v663, %v683
    %v686 = vlaneseq
    %v687 = vshrl.u32 %v686, 7
    %v688 = vsub.s32 3, %v687
    %v689 = vrot.slane %v620, %v688
    %v690 = vlaneseq
    %v691 = vshrl.u32 %v690, 7
    %v692 = vsub.s32 7, %v691
    %v693 = vrot.slane %v620, %v692
    %v696 = vlaneseq
    %v697 = vshrl.u32 %v696, 7
    %v698 = vsub.s32 3, %v697
    %v699 = vrot.slane %v689, %v698
    %v700 = vlaneseq
    %v701 = vshrl.u32 %v700, 7
    %v702 = vsub.s32 3, %v701
    %v703 = vrot.slane %v693, %v702
    %v704 = vmul.f32 %v422, %v699
    %v705 = vmul.f32 %v422, %v703
    %v706 = vadd.f32 %v684, %v704
    %v707 = vadd.f32 %v685, %v705
    %v708 = vadd.f32 %v706, %v405
    %v709 = vadd.f32 %v707, %v405
    %v710 = vtanh.pop %v708
    %v711 = vtanh.pop %v709
    %v712 = vmul.f32 %v710, -0.3
    %v713 = vmul.f32 %v711, -0.3
    %v716 = vcombine.low %v712, %v713
    %v718 = vadd.f32 %v620, %v716
    %v720 = vlaneseq
    %v721 = vshrl.u32 %v720, 7
    %v722 = vsub.s32 0, %v721
    %v723 = vrot.slane %v718, %v722
    %v724 = vlaneseq
    %v725 = vshrl.u32 %v724, 7
    %v726 = vsub.s32 4, %v725
    %v727 = vrot.slane %v718, %v726
    %v730 = vlaneseq
    %v731 = vshrl.u32 %v730, 7
    %v732 = vsub.s32 0, %v731
    %v733 = vrot.slane %v723, %v732
    %v734 = vlaneseq
    %v735 = vshrl.u32 %v734, 7
    %v736 = vsub.s32 0, %v735
    %v737 = vrot.slane %v727, %v736
    %v738 = vmul.f32 %v410, %v733
    %v739 = vmul.f32 %v410, %v737
    %v740 = vlaneseq
    %v741 = vshrl.u32 %v740, 7
    %v742 = vsub.s32 1, %v741
    %v743 = vrot.slane %v718, %v742
    %v744 = vlaneseq
    %v745 = vshrl.u32 %v744, 7
    %v746 = vsub.s32 5, %v745
    %v747 = vrot.slane %v718, %v746
    %v750 = vlaneseq
    %v751 = vshrl.u32 %v750, 7
    %v752 = vsub.s32 1, %v751
    %v753 = vrot.slane %v743, %v752
    %v754 = vlaneseq
    %v755 = vshrl.u32 %v754, 7
    %v756 = vsub.s32 1, %v755
    %v757 = vrot.slane %v747, %v756
    %v758 = vmul.f32 %v414, %v753
    %v759 = vmul.f32 %v414, %v757
    %v760 = vadd.f32 %v738, %v758
    %v761 = vadd.f32 %v739, %v759
    %v762 = vlaneseq
    %v763 = vshrl.u32 %v762, 7
    %v764 = vsub.s32 2, %v763
    %v765 = vrot.slane %v718, %v764
    %v766 = vlaneseq
    %v767 = vshrl.u32 %v766, 7
    %v768 = vsub.s32 6, %v767
    %v769 = vrot.slane %v718, %v768
    %v772 = vlaneseq
    %v773 = vshrl.u32 %v772, 7
    %v774 = vsub.s32 2, %v773
    %v775 = vrot.slane %v765, %v774
    %v776 = vlaneseq
    %v777 = vshrl.u32 %v776, 7
    %v778 = vsub.s32 2, %v777
    %v779 = vrot.slane %v769, %v778
    %v780 = vmul.f32 %v418, %v775
    %v781 = vmul.f32 %v418, %v779
    %v782 = vadd.f32 %v760, %v780
    %v783 = vadd.f32 %v761, %v781
    %v784 = vlaneseq
    %v785 = vshrl.u32 %v784, 7
    %v786 = vsub.s32 3, %v785
    %v787 = vrot.slane %v718, %v786
    %v788 = vlaneseq
    %v789 = vshrl.u32 %v788, 7
    %v790 = vsub.s32 7, %v789
    %v791 = vrot.slane %v718, %v790
    %v794 = vlaneseq
    %v795 = vshrl.u32 %v794, 7
    %v796 = vsub.s32 3, %v795
    %v797 = vrot.slane %v787, %v796
    %v798 = vlaneseq
    %v799 = vshrl.u32 %v798, 7
    %v800 = vsub.s32 3, %v799
    %v801 = vrot.slane %v791, %v800
    %v802 = vmul.f32 %v422, %v797
    %v803 = vmul.f32 %v422, %v801
    %v804 = vadd.f32 %v782, %v802
    %v805 = vadd.f32 %v783, %v803
    %v806 = vadd.f32 %v804, %v406
    %v807 = vadd.f32 %v805, %v406
    %v808 = vtanh.pop %v806
    %v809 = vtanh.pop %v807
    %v810 = vmul.f32 %v808, -0.1
    %v811 = vmul.f32 %v809, -0.1
    %v814 = vcombine.low %v810, %v811
    %v816 = vadd.f32 %v718, %v814
    %v817 = vmul.f32 %v816, 5.4899807
    %819 = vset.pattern.permute.xlu0 0
    %820 = vperm.xlu0 %819, %v59
    %v821 = vpop.permute.xlu0 %820
    %v824 = vlaneseq
    %v825 = vshrl.u32 %v824, 7
    %v826 = vsub.s32 0, %v825
    %v827 = vrot.slane %v817, %v826
    %v828 = vlaneseq
    %v829 = vshrl.u32 %v828, 7
    %v830 = vsub.s32 4, %v829
    %v831 = vrot.slane %v817, %v830
    %v834 = vlaneseq
    %v835 = vshrl.u32 %v834, 7
    %v836 = vsub.s32 0, %v835
    %v837 = vrot.slane %v827, %v836
    %v838 = vlaneseq
    %v839 = vshrl.u32 %v838, 7
    %v840 = vsub.s32 0, %v839
    %v841 = vrot.slane %v831, %v840
    %v842 = vmul.f32 %v821, %v837
    %v843 = vmul.f32 %v821, %v841
    %844 = vset.pattern.permute.xlu0 1
    %845 = vperm.xlu0 %844, %v59
    %v846 = vpop.permute.xlu0 %845
    %v848 = vlaneseq
    %v849 = vshrl.u32 %v848, 7
    %v850 = vsub.s32 1, %v849
    %v851 = vrot.slane %v817, %v850
    %v852 = vlaneseq
    %v853 = vshrl.u32 %v852, 7
    %v854 = vsub.s32 5, %v853
    %v855 = vrot.slane %v817, %v854
    %v858 = vlaneseq
    %v859 = vshrl.u32 %v858, 7
    %v860 = vsub.s32 1, %v859
    %v861 = vrot.slane %v851, %v860
    %v862 = vlaneseq
    %v863 = vshrl.u32 %v862, 7
    %v864 = vsub.s32 1, %v863
    %v865 = vrot.slane %v855, %v864
    %v866 = vmul.f32 %v846, %v861
    %v867 = vmul.f32 %v846, %v865
    %v868 = vadd.f32 %v842, %v866
    %v869 = vadd.f32 %v843, %v867
    %870 = vset.pattern.permute.xlu0 2
    %871 = vperm.xlu0 %870, %v59
    %v872 = vpop.permute.xlu0 %871
    %v874 = vlaneseq
    %v875 = vshrl.u32 %v874, 7
    %v876 = vsub.s32 2, %v875
    %v877 = vrot.slane %v817, %v876
    %v878 = vlaneseq
    %v879 = vshrl.u32 %v878, 7
    %v880 = vsub.s32 6, %v879
    %v881 = vrot.slane %v817, %v880
    %v884 = vlaneseq
    %v885 = vshrl.u32 %v884, 7
    %v886 = vsub.s32 2, %v885
    %v887 = vrot.slane %v877, %v886
    %v888 = vlaneseq
    %v889 = vshrl.u32 %v888, 7
    %v890 = vsub.s32 2, %v889
    %v891 = vrot.slane %v881, %v890
    %v892 = vmul.f32 %v872, %v887
    %v893 = vmul.f32 %v872, %v891
    %v894 = vadd.f32 %v868, %v892
    %v895 = vadd.f32 %v869, %v893
    %896 = vset.pattern.permute.xlu0 3
    %897 = vperm.xlu0 %896, %v59
    %v898 = vpop.permute.xlu0 %897
    %v900 = vlaneseq
    %v901 = vshrl.u32 %v900, 7
    %v902 = vsub.s32 3, %v901
    %v903 = vrot.slane %v817, %v902
    %v904 = vlaneseq
    %v905 = vshrl.u32 %v904, 7
    %v906 = vsub.s32 7, %v905
    %v907 = vrot.slane %v817, %v906
    %v910 = vlaneseq
    %v911 = vshrl.u32 %v910, 7
    %v912 = vsub.s32 3, %v911
    %v913 = vrot.slane %v903, %v912
    %v914 = vlaneseq
    %v915 = vshrl.u32 %v914, 7
    %v916 = vsub.s32 3, %v915
    %v917 = vrot.slane %v907, %v916
    %v918 = vmul.f32 %v898, %v913
    %v919 = vmul.f32 %v898, %v917
    %v920 = vadd.f32 %v894, %v918
    %v921 = vadd.f32 %v895, %v919
    %923 = vset.pattern.permute.xlu0 0
    %924 = vperm.xlu0 %923, %v60
    %v925 = vpop.permute.xlu0 %924
    %v927 = vadd.f32 %v920, %v925
    %v928 = vadd.f32 %v921, %v925
    %v929 = vtanh.pop %v927
    %v930 = vtanh.pop %v928
    %v931 = vmul.f32 %v929, 0.5
    %v932 = vmul.f32 %v930, 0.5
    %v933 = vadd.f32 %v931, 0.5
    %v934 = vadd.f32 %v932, 0.5
    %v935 = vmax.f32 %v933, 0.0
    %v936 = vmax.f32 %v934, 0.0
    %v937 = vmin.f32 %v935, 1.0
    %v938 = vmin.f32 %v936, 1.0
    %v941 = vcombine.low %v937, %v938
    %943 = vst [vmem:[#allocation8] sm:$0x77] %v941
    // Predicated region
    $region26: #{tpu_custom_call.1} parent=1 // pred_check
      _
    $region27: #{tpu_custom_call.1} parent=1 // pred_check_branch
      %945 = sbr.rel (0) target = $region29
    $region28: #{tpu_custom_call.1} parent=1 // pred_region
      %s947 = ssub.s32 128, 128
      %948 = vsyncadd [#allocation4], %s947
      %s950 = sshll.u32 [#allocation8], 4
      %s951 = int_to_ptr.vmem [resolvable:$true] %s950
      %953 = dma.vmem_to_hbm [thread:$0]  %s951, 128, %s3, [#allocation4]
    $region29: #{tpu_custom_call.1} parent=1 // pred_fallthru
      _
    // Predicated region
    $region30: #{tpu_custom_call.1} parent=1 // pred_check
      _
    $region31: #{tpu_custom_call.1} parent=1 // pred_check_branch
      %955 = sbr.rel (0) target = $region33
    $region32: #{tpu_custom_call.1} parent=1 // pred_region
      %956 = dma.done [#allocation4], 128
    $region33: #{tpu_custom_call.1} parent=1 // pred_fallthru
      _
    %957 = vsyncpa [#allocation3], 1
    %958 = vsyncpa [#allocation6], 1
    %959 = vsyncpa [#allocation4], 1

</llo_original>
